<compile_context>
chip_gen: v6e
topology: v6e:2x2x1
jax: 0.10.0
libtpu: 0.0.40
codegen_flags: <defaults>
</compile_context>

<pallas_src>
import math
import jax
import jax.numpy as jnp
from jax.experimental import pallas as pl
from jax.experimental.pallas import tpu as pltpu

# ---- problem sizes (small, consistent with the module) ----
B = 2          # batch
N = 8          # nodes (sequence)
D = 32         # model_size
H = 4          # num_head
DH = D // H    # head dim
FF = 64        # ff_size
E = 8          # edge_dim_size
BN_EPS = 1e-5

HEAD_BLK = 3 * DH + N          # per-head lane block in the fused front-end: q|k|v|eb
FUSED_LANES = H * HEAD_BLK     # 128
FRONT_ROWS = D + N * E         # 96

# Row offsets inside the packed (232, 128) weight slab.
R_FRONT = 0                    # (96, 128)  fused [Wqkv | Wedge] block matrix
R_WO = R_FRONT + FRONT_ROWS    # 96  : (D, D)  output projection at lanes 0:D
R_W1 = R_WO + D                # 128 : (D, FF) FFN layer 1 at lanes 0:FF
R_W2 = R_W1 + D                # 160 : (FF, D) FFN layer 2 at lanes 0:D
R_BIAS = R_W2 + FF             # 224 : (8, 128) bias / BN parameter rows
W_ROWS = R_BIAS + 8            # 232

# Rows inside the (8, 128) bias block.
_B_FRONT = 0   # fused front-end bias, head-major [bq_h | bk_h | bv_h | be_h*1_N]
_B_BO = 1      # (1, D)
_B_FF1 = 2     # (1, FF)
_B_FF2 = 3     # (1, D)
_B_G1 = 4      # (1, D)
_B_B1 = 5      # (1, D)
_B_G2 = 6      # (1, D)
_B_B2 = 7      # (1, D)


def _encoder_kernel(x_ref, w_ref, o_ref):
    bn = x_ref.shape[0]                        # B*N
    scale = 1.0 / math.sqrt(DH)

    x = x_ref[...]                             # (B*N, D + N*E)
    hf = x[:, 0:D]                             # residual input  (B*N, D)
    Pb = w_ref[R_BIAS:R_BIAS + 8, :]           # (8, 128) bias / BN params

    # ---- fused front end: Q, K, V and edge bias for ALL heads in ONE matmul ----
    fused = jnp.dot(x, w_ref[R_FRONT:R_FRONT + FRONT_ROWS, :],
                    preferred_element_type=jnp.float32)
    fused = fused + Pb[_B_FRONT:_B_FRONT + 1, :]            # (B*N, 128)

    # ---- split heads once: head-major (H*B, N, HEAD_BLK) group tensor ----
    g = jnp.concatenate(
        [fused[:, hh * HEAD_BLK:(hh + 1) * HEAD_BLK].reshape(B, N, HEAD_BLK)
         for hh in range(H)], axis=0)                        # (H*B, N, 32)
    q = g[:, :, 0:DH]
    k = g[:, :, DH:2 * DH]
    v = g[:, :, 2 * DH:3 * DH]
    eb = g[:, :, 3 * DH:3 * DH + N]                          # (H*B, N, N)

    # ---- all-head attention: one score einsum, one softmax, one PV einsum ----
    s = jnp.einsum('gqd,gkd->gqk', q, k,
                   preferred_element_type=jnp.float32) * scale + eb
    s = s - jnp.max(s, axis=-1, keepdims=True)
    p = jnp.exp(s)
    denom = jnp.sum(p, axis=-1, keepdims=True)               # (H*B, N, 1)
    og = jnp.einsum('gqk,gkd->gqd', p, v,
                    preferred_element_type=jnp.float32)      # (H*B, N, DH)
    # normalize AFTER P@V; exact reciprocal (denom >= 1) for numeric parity
    og = og * pl.reciprocal(denom, approx=False)

    # ---- merge heads back to (B*N, D) and output-project ----
    attn = jnp.concatenate(
        [og[hh * B:(hh + 1) * B].reshape(bn, DH) for hh in range(H)], axis=-1)
    attn = jnp.dot(attn, w_ref[R_WO:R_WO + D, 0:D],
                   preferred_element_type=jnp.float32)
    attn = attn + Pb[_B_BO:_B_BO + 1, 0:D]

    # ---- residual + BatchNorm1d (training-mode batch stats over B*N rows) ----
    # TODO(synk): BatchNorm running-mean/var tracking (eval-mode parity) not implemented.
    h1 = hf + attn
    m1 = jnp.mean(h1, axis=0, keepdims=True)
    d1 = h1 - m1
    v1 = jnp.mean(d1 * d1, axis=0, keepdims=True)
    h1n = d1 * jax.lax.rsqrt(v1 + BN_EPS) * Pb[_B_G1:_B_G1 + 1, 0:D] \
        + Pb[_B_B1:_B_B1 + 1, 0:D]

    # ---- FFN ----
    ff = jnp.dot(h1n, w_ref[R_W1:R_W1 + D, 0:FF],
                 preferred_element_type=jnp.float32)
    ff = jnp.maximum(ff + Pb[_B_FF1:_B_FF1 + 1, 0:FF], 0.0)
    ff = jnp.dot(ff, w_ref[R_W2:R_W2 + FF, 0:D],
                 preferred_element_type=jnp.float32)
    ff = ff + Pb[_B_FF2:_B_FF2 + 1, 0:D]

    # ---- residual + BatchNorm1d ----
    h2 = h1n + ff
    m2 = jnp.mean(h2, axis=0, keepdims=True)
    d2 = h2 - m2
    v2 = jnp.mean(d2 * d2, axis=0, keepdims=True)
    h2n = d2 * jax.lax.rsqrt(v2 + BN_EPS) * Pb[_B_G2:_B_G2 + 1, 0:D] \
        + Pb[_B_B2:_B_B2 + 1, 0:D]

    # TODO(synk): mask handling (`h_out[mask] = 0` and masked attention) omitted;
    #             the example forward call uses mask=None.
    o_ref[...] = h2n.astype(o_ref.dtype)       # (B*N, D)


def prepare_weights(params):
    """Pack ALL weights / biases into one (232, 128) f32 slab. Run ONCE at init."""
    f32 = jnp.float32

    # Front-end block matrix [[Wqkv, 0], [0, Wedge]] with HEAD-MAJOR output columns:
    # lanes h*32 + [0:8]=q_h, [8:16]=k_h, [16:24]=v_h, [24:32]=edge bias (key j).
    wq3 = params['wq'].reshape(D, H, DH)
    wk3 = params['wk'].reshape(D, H, DH)
    wv3 = params['wv'].reshape(D, H, DH)
    z3 = jnp.zeros((D, H, N), f32)
    qkv_block = jnp.concatenate([wq3, wk3, wv3, z3], axis=-1).reshape(D, FUSED_LANES)

    # Edge block: rows j*E+e, columns h*HEAD_BLK + 3*DH + j  hold we[e, h] (block diag).
    edge4 = jnp.einsum('eh,jk->jehk', params['we'],
                       jnp.eye(N, dtype=f32))                    # (N, E, H, N)
    edge4 = jnp.pad(edge4, ((0, 0), (0, 0), (0, 0), (3 * DH, 0)))  # (N, E, H, 32)
    edge_block = edge4.reshape(N * E, FUSED_LANES)               # (64, 128)

    front = jnp.concatenate([qkv_block, edge_block], axis=0)     # (96, 128)

    pad_lanes = lambda v: jnp.pad(v, ((0, 0), (0, 128 - v.shape[1])))
    wo_block = pad_lanes(params['wo'])                           # (32, 128)
    w1_block = pad_lanes(params['w1'])                           # (32, 128)
    w2_block = pad_lanes(params['w2'])                           # (64, 128)

    # Bias rows.  Front-end bias is head-major like the fused matmul columns.
    bq3 = params['bq'].reshape(H, DH)
    bk3 = params['bk'].reshape(H, DH)
    bv3 = params['bv'].reshape(H, DH)
    be3 = jnp.broadcast_to(params['be'].reshape(H, 1), (H, N))
    front_bias = jnp.concatenate([bq3, bk3, bv3, be3], axis=-1).reshape(1, FUSED_LANES)

    bias_block = jnp.concatenate([
        front_bias,
        pad_lanes(params['bo']), pad_lanes(params['bff1']), pad_lanes(params['bff2']),
        pad_lanes(params['g1']), pad_lanes(params['beta1']),
        pad_lanes(params['g2']), pad_lanes(params['beta2'])], axis=0)   # (8, 128)

    w_packed = jnp.concatenate([front, wo_block, w1_block, w2_block, bias_block],
                               axis=0)                           # (232, 128)
    assert w_packed.shape == (W_ROWS, 128)
    return w_packed


@jax.jit
def graph_encoder_layer(h, e, w_packed):
    """Forward pass.  `w_packed` is the cached result of prepare_weights()."""
    b, n, d = h.shape
    # Single activation slab [hf | e2]  →  exactly-96-column MXU operand.
    x = jnp.concatenate([h.reshape(b * n, d), e.reshape(b * n, n * E)],
                        axis=-1).astype(jnp.float32)             # (B*N, D + N*E)

    vmem = pl.BlockSpec(memory_space=pltpu.MemorySpace.VMEM)
    out2d = pl.pallas_call(
        _encoder_kernel,
        out_shape=jax.ShapeDtypeStruct((b * n, d), jnp.float32),
        in_specs=[vmem, vmem],
        out_specs=vmem,
    )(x, w_packed)
    return out2d.reshape(b, n, d)


def _init_params(key):
    ks = jax.random.split(key, 16)

    def lin(k, fan_in, fan_out):
        bound = 1.0 / math.sqrt(fan_in)
        kw, kb = jax.random.split(k)
        w = jax.random.uniform(kw, (fan_in, fan_out), jnp.float32, -bound, bound)
        b = jax.random.uniform(kb, (1, fan_out), jnp.float32, -bound, bound)
        return w, b

    wq, bq = lin(ks[0], D, D)
    wk, bk = lin(ks[1], D, D)
    wv, bv = lin(ks[2], D, D)
    we, be = lin(ks[3], E, H)
    wo, bo = lin(ks[4], D, D)
    w1, bff1 = lin(ks[5], D, FF)
    w2, bff2 = lin(ks[6], FF, D)
    return dict(
        wq=wq, bq=bq, wk=wk, bk=bk, wv=wv, bv=bv,
        we=we, be=be, wo=wo, bo=bo,
        w1=w1, bff1=bff1, w2=w2, bff2=bff2,
        g1=jnp.ones((1, D), jnp.float32), beta1=jnp.zeros((1, D), jnp.float32),
        g2=jnp.ones((1, D), jnp.float32), beta2=jnp.zeros((1, D), jnp.float32),
    )


if __name__ == "__main__":
    key = jax.random.PRNGKey(0)
    kh, ke, kp = jax.random.split(key, 3)
    h = jax.random.normal(kh, (B, N, D), jnp.float32)
    e = jax.random.normal(ke, (B, N, N, E), jnp.float32)
    params = _init_params(kp)

    # One-time constant packing (cached across forward calls).
    w_packed = jax.block_until_ready(prepare_weights(params))

    out = graph_encoder_layer(h, e, w_packed)
    jax.block_until_ready(out)
    assert out.shape == (B, N, D)
    print("KERNEL_OK")
</pallas_src>

<mosaic_0001>
module attributes {stable_mosaic.version = 11 : i64} {
  func.func @_encoder_kernel(%arg0: memref<16x96xf32, #tpu.memory_space<vmem>>, %arg1: memref<232x128xf32, #tpu.memory_space<vmem>>, %arg2: memref<16x32xf32, #tpu.memory_space<vmem>>) attributes {dimension_semantics = [], scalar_prefetch = 0 : i64, scratch_operands = 0 : i64, tpu.core_type = #tpu.core_type<tc>} {
    %c0 = arith.constant 0 : index
    %c0_0 = arith.constant 0 : index
    %0 = vector.load %arg0[%c0, %c0_0] : memref<16x96xf32, #tpu.memory_space<vmem>>, vector<16x96xf32>
    %1 = vector.extract_strided_slice %0 {offsets = [0, 0], sizes = [16, 32], strides = [1, 1]} : vector<16x96xf32> to vector<16x32xf32>
    %c224 = arith.constant 224 : index
    %c0_1 = arith.constant 0 : index
    %2 = vector.load %arg1[%c224, %c0_1] : memref<232x128xf32, #tpu.memory_space<vmem>>, vector<8x128xf32>
    %c0_2 = arith.constant 0 : index
    %c0_3 = arith.constant 0 : index
    %3 = vector.load %arg1[%c0_2, %c0_3] : memref<232x128xf32, #tpu.memory_space<vmem>>, vector<96x128xf32>
    %cst = arith.constant dense<0.000000e+00> : vector<16x128xf32>
    %4 = tpu.matmul %0, %3, %cst {dimension_numbers = #tpu.dot_dimension_numbers<[1], [0], [0], [1], [0, 0, 1, 1], [], []>} : vector<16x96xf32>, vector<96x128xf32>, vector<16x128xf32> -> vector<16x128xf32>
    %5 = vector.extract_strided_slice %2 {offsets = [0, 0], sizes = [1, 128], strides = [1, 1]} : vector<8x128xf32> to vector<1x128xf32>
    %6 = vector.broadcast %5 : vector<1x128xf32> to vector<16x128xf32>
    %7 = arith.addf %4, %6 : vector<16x128xf32>
    %8 = vector.extract_strided_slice %7 {offsets = [0, 0], sizes = [16, 32], strides = [1, 1]} : vector<16x128xf32> to vector<16x32xf32>
    %9 = vector.shape_cast %8 : vector<16x32xf32> to vector<2x8x32xf32>
    %10 = vector.extract_strided_slice %7 {offsets = [0, 32], sizes = [16, 32], strides = [1, 1]} : vector<16x128xf32> to vector<16x32xf32>
    %11 = vector.shape_cast %10 : vector<16x32xf32> to vector<2x8x32xf32>
    %12 = vector.extract_strided_slice %7 {offsets = [0, 64], sizes = [16, 32], strides = [1, 1]} : vector<16x128xf32> to vector<16x32xf32>
    %13 = vector.shape_cast %12 : vector<16x32xf32> to vector<2x8x32xf32>
    %14 = vector.extract_strided_slice %7 {offsets = [0, 96], sizes = [16, 32], strides = [1, 1]} : vector<16x128xf32> to vector<16x32xf32>
    %15 = vector.shape_cast %14 : vector<16x32xf32> to vector<2x8x32xf32>
    %16 = tpu.concatenate %9, %11, %13, %15 in 0 : vector<2x8x32xf32>, vector<2x8x32xf32>, vector<2x8x32xf32>, vector<2x8x32xf32> -> vector<8x8x32xf32>
    %17 = vector.extract_strided_slice %16 {offsets = [0, 0, 0], sizes = [8, 8, 8], strides = [1, 1, 1]} : vector<8x8x32xf32> to vector<8x8x8xf32>
    %18 = vector.extract_strided_slice %16 {offsets = [0, 0, 8], sizes = [8, 8, 8], strides = [1, 1, 1]} : vector<8x8x32xf32> to vector<8x8x8xf32>
    %19 = vector.extract_strided_slice %16 {offsets = [0, 0, 16], sizes = [8, 8, 8], strides = [1, 1, 1]} : vector<8x8x32xf32> to vector<8x8x8xf32>
    %20 = vector.extract_strided_slice %16 {offsets = [0, 0, 24], sizes = [8, 8, 8], strides = [1, 1, 1]} : vector<8x8x32xf32> to vector<8x8x8xf32>
    "tpu.trace_start"() <{level = 10 : i32, message = "gqd,gkd->gqk"}> : () -> ()
    %cst_4 = arith.constant dense<0.000000e+00> : vector<8x8x8xf32>
    %21 = tpu.matmul %17, %18, %cst_4 {dimension_numbers = #tpu.dot_dimension_numbers<[2], [2], [1], [1], [0, 0, 0, 1, 1, 1], [0], [0]>} : vector<8x8x8xf32>, vector<8x8x8xf32>, vector<8x8x8xf32> -> vector<8x8x8xf32>
    "tpu.trace_stop"() : () -> ()
    %cst_5 = arith.constant 0.353553385 : f32
    %22 = vector.broadcast %cst_5 : f32 to vector<8x8x8xf32>
    %23 = arith.mulf %21, %22 : vector<8x8x8xf32>
    %24 = arith.addf %23, %20 : vector<8x8x8xf32>
    %cst_6 = arith.constant dense<0xFF800000> : vector<8x8xf32>
    %25 = vector.multi_reduction <maximumf>, %24, %cst_6 [2] : vector<8x8x8xf32> to vector<8x8xf32>
    %26 = vector.shape_cast %25 : vector<8x8xf32> to vector<8x8x1xf32>
    %27 = vector.broadcast %26 : vector<8x8x1xf32> to vector<8x8x8xf32>
    %28 = arith.subf %24, %27 : vector<8x8x8xf32>
    %29 = math.exp %28 : vector<8x8x8xf32>
    %cst_7 = arith.constant dense<0.000000e+00> : vector<8x8xf32>
    %30 = vector.multi_reduction <add>, %29, %cst_7 [2] : vector<8x8x8xf32> to vector<8x8xf32>
    %31 = vector.shape_cast %30 : vector<8x8xf32> to vector<8x8x1xf32>
    "tpu.trace_start"() <{level = 10 : i32, message = "gqk,gkd->gqd"}> : () -> ()
    %cst_8 = arith.constant dense<0.000000e+00> : vector<8x8x8xf32>
    %32 = tpu.matmul %29, %19, %cst_8 {dimension_numbers = #tpu.dot_dimension_numbers<[2], [1], [1], [2], [0, 0, 0, 1, 1, 2], [0], [0]>} : vector<8x8x8xf32>, vector<8x8x8xf32>, vector<8x8x8xf32> -> vector<8x8x8xf32>
    "tpu.trace_stop"() : () -> ()
    %33 = tpu.reciprocal %31 : vector<8x8x1xf32> -> vector<8x8x1xf32>
    %34 = vector.broadcast %33 : vector<8x8x1xf32> to vector<8x8x8xf32>
    %35 = arith.mulf %32, %34 : vector<8x8x8xf32>
    %36 = vector.extract_strided_slice %35 {offsets = [0, 0, 0], sizes = [2, 8, 8], strides = [1, 1, 1]} : vector<8x8x8xf32> to vector<2x8x8xf32>
    %37 = vector.shape_cast %36 : vector<2x8x8xf32> to vector<16x8xf32>
    %38 = vector.extract_strided_slice %35 {offsets = [2, 0, 0], sizes = [2, 8, 8], strides = [1, 1, 1]} : vector<8x8x8xf32> to vector<2x8x8xf32>
    %39 = vector.shape_cast %38 : vector<2x8x8xf32> to vector<16x8xf32>
    %40 = vector.extract_strided_slice %35 {offsets = [4, 0, 0], sizes = [2, 8, 8], strides = [1, 1, 1]} : vector<8x8x8xf32> to vector<2x8x8xf32>
    %41 = vector.shape_cast %40 : vector<2x8x8xf32> to vector<16x8xf32>
    %42 = vector.extract_strided_slice %35 {offsets = [6, 0, 0], sizes = [2, 8, 8], strides = [1, 1, 1]} : vector<8x8x8xf32> to vector<2x8x8xf32>
    %43 = vector.shape_cast %42 : vector<2x8x8xf32> to vector<16x8xf32>
    %44 = tpu.concatenate %37, %39, %41, %43 in 1 : vector<16x8xf32>, vector<16x8xf32>, vector<16x8xf32>, vector<16x8xf32> -> vector<16x32xf32>
    %c96 = arith.constant 96 : index
    %c0_9 = arith.constant 0 : index
    %45 = vector.load %arg1[%c96, %c0_9] : memref<232x128xf32, #tpu.memory_space<vmem>>, vector<32x32xf32>
    %cst_10 = arith.constant dense<0.000000e+00> : vector<16x32xf32>
    %46 = tpu.matmul %44, %45, %cst_10 {dimension_numbers = #tpu.dot_dimension_numbers<[1], [0], [0], [1], [0, 0, 1, 1], [], []>} : vector<16x32xf32>, vector<32x32xf32>, vector<16x32xf32> -> vector<16x32xf32>
    %47 = vector.extract_strided_slice %2 {offsets = [1, 0], sizes = [1, 32], strides = [1, 1]} : vector<8x128xf32> to vector<1x32xf32>
    %48 = vector.broadcast %47 : vector<1x32xf32> to vector<16x32xf32>
    %49 = arith.addf %46, %48 : vector<16x32xf32>
    %50 = arith.addf %1, %49 : vector<16x32xf32>
    %cst_11 = arith.constant dense<0.000000e+00> : vector<32xf32>
    %51 = vector.multi_reduction <add>, %50, %cst_11 [0] : vector<16x32xf32> to vector<32xf32>
    %52 = vector.shape_cast %51 : vector<32xf32> to vector<1x32xf32>
    %cst_12 = arith.constant 1.600000e+01 : f32
    %53 = vector.broadcast %cst_12 : f32 to vector<1x32xf32>
    %54 = arith.divf %52, %53 : vector<1x32xf32>
    %55 = vector.broadcast %54 : vector<1x32xf32> to vector<16x32xf32>
    %56 = arith.subf %50, %55 : vector<16x32xf32>
    %57 = arith.mulf %56, %56 : vector<16x32xf32>
    %cst_13 = arith.constant dense<0.000000e+00> : vector<32xf32>
    %58 = vector.multi_reduction <add>, %57, %cst_13 [0] : vector<16x32xf32> to vector<32xf32>
    %59 = vector.shape_cast %58 : vector<32xf32> to vector<1x32xf32>
    %cst_14 = arith.constant 1.600000e+01 : f32
    %60 = vector.broadcast %cst_14 : f32 to vector<1x32xf32>
    %61 = arith.divf %59, %60 : vector<1x32xf32>
    %cst_15 = arith.constant 9.99999974E-6 : f32
    %62 = vector.broadcast %cst_15 : f32 to vector<1x32xf32>
    %63 = arith.addf %61, %62 : vector<1x32xf32>
    %64 = math.rsqrt %63 : vector<1x32xf32>
    %65 = vector.broadcast %64 : vector<1x32xf32> to vector<16x32xf32>
    %66 = arith.mulf %56, %65 : vector<16x32xf32>
    %67 = vector.extract_strided_slice %2 {offsets = [4, 0], sizes = [1, 32], strides = [1, 1]} : vector<8x128xf32> to vector<1x32xf32>
    %68 = vector.broadcast %67 : vector<1x32xf32> to vector<16x32xf32>
    %69 = arith.mulf %66, %68 : vector<16x32xf32>
    %70 = vector.extract_strided_slice %2 {offsets = [5, 0], sizes = [1, 32], strides = [1, 1]} : vector<8x128xf32> to vector<1x32xf32>
    %71 = vector.broadcast %70 : vector<1x32xf32> to vector<16x32xf32>
    %72 = arith.addf %69, %71 : vector<16x32xf32>
    %c128 = arith.constant 128 : index
    %c0_16 = arith.constant 0 : index
    %73 = vector.load %arg1[%c128, %c0_16] : memref<232x128xf32, #tpu.memory_space<vmem>>, vector<32x64xf32>
    %cst_17 = arith.constant dense<0.000000e+00> : vector<16x64xf32>
    %74 = tpu.matmul %72, %73, %cst_17 {dimension_numbers = #tpu.dot_dimension_numbers<[1], [0], [0], [1], [0, 0, 1, 1], [], []>} : vector<16x32xf32>, vector<32x64xf32>, vector<16x64xf32> -> vector<16x64xf32>
    %75 = vector.extract_strided_slice %2 {offsets = [2, 0], sizes = [1, 64], strides = [1, 1]} : vector<8x128xf32> to vector<1x64xf32>
    %76 = vector.broadcast %75 : vector<1x64xf32> to vector<16x64xf32>
    %77 = arith.addf %74, %76 : vector<16x64xf32>
    %cst_18 = arith.constant 0.000000e+00 : f32
    %78 = vector.broadcast %cst_18 : f32 to vector<16x64xf32>
    %79 = arith.maximumf %77, %78 : vector<16x64xf32>
    %c160 = arith.constant 160 : index
    %c0_19 = arith.constant 0 : index
    %80 = vector.load %arg1[%c160, %c0_19] : memref<232x128xf32, #tpu.memory_space<vmem>>, vector<64x32xf32>
    %cst_20 = arith.constant dense<0.000000e+00> : vector<16x32xf32>
    %81 = tpu.matmul %79, %80, %cst_20 {dimension_numbers = #tpu.dot_dimension_numbers<[1], [0], [0], [1], [0, 0, 1, 1], [], []>} : vector<16x64xf32>, vector<64x32xf32>, vector<16x32xf32> -> vector<16x32xf32>
    %82 = vector.extract_strided_slice %2 {offsets = [3, 0], sizes = [1, 32], strides = [1, 1]} : vector<8x128xf32> to vector<1x32xf32>
    %83 = vector.broadcast %82 : vector<1x32xf32> to vector<16x32xf32>
    %84 = arith.addf %81, %83 : vector<16x32xf32>
    %85 = arith.addf %72, %84 : vector<16x32xf32>
    %cst_21 = arith.constant dense<0.000000e+00> : vector<32xf32>
    %86 = vector.multi_reduction <add>, %85, %cst_21 [0] : vector<16x32xf32> to vector<32xf32>
    %87 = vector.shape_cast %86 : vector<32xf32> to vector<1x32xf32>
    %cst_22 = arith.constant 1.600000e+01 : f32
    %88 = vector.broadcast %cst_22 : f32 to vector<1x32xf32>
    %89 = arith.divf %87, %88 : vector<1x32xf32>
    %90 = vector.broadcast %89 : vector<1x32xf32> to vector<16x32xf32>
    %91 = arith.subf %85, %90 : vector<16x32xf32>
    %92 = arith.mulf %91, %91 : vector<16x32xf32>
    %cst_23 = arith.constant dense<0.000000e+00> : vector<32xf32>
    %93 = vector.multi_reduction <add>, %92, %cst_23 [0] : vector<16x32xf32> to vector<32xf32>
    %94 = vector.shape_cast %93 : vector<32xf32> to vector<1x32xf32>
    %cst_24 = arith.constant 1.600000e+01 : f32
    %95 = vector.broadcast %cst_24 : f32 to vector<1x32xf32>
    %96 = arith.divf %94, %95 : vector<1x32xf32>
    %cst_25 = arith.constant 9.99999974E-6 : f32
    %97 = vector.broadcast %cst_25 : f32 to vector<1x32xf32>
    %98 = arith.addf %96, %97 : vector<1x32xf32>
    %99 = math.rsqrt %98 : vector<1x32xf32>
    %100 = vector.broadcast %99 : vector<1x32xf32> to vector<16x32xf32>
    %101 = arith.mulf %91, %100 : vector<16x32xf32>
    %102 = vector.extract_strided_slice %2 {offsets = [6, 0], sizes = [1, 32], strides = [1, 1]} : vector<8x128xf32> to vector<1x32xf32>
    %103 = vector.broadcast %102 : vector<1x32xf32> to vector<16x32xf32>
    %104 = arith.mulf %101, %103 : vector<16x32xf32>
    %105 = vector.extract_strided_slice %2 {offsets = [7, 0], sizes = [1, 32], strides = [1, 1]} : vector<8x128xf32> to vector<1x32xf32>
    %106 = vector.broadcast %105 : vector<1x32xf32> to vector<16x32xf32>
    %107 = arith.addf %104, %106 : vector<16x32xf32>
    %c0_26 = arith.constant 0 : index
    %c0_27 = arith.constant 0 : index
    %108 = vector.load %arg2[%c0_26, %c0_27] : memref<16x32xf32, #tpu.memory_space<vmem>>, vector<16x32xf32>
    tpu.vector_store %arg2[%c0_26, %c0_27], %107 {strides = array<i32>} : memref<16x32xf32, #tpu.memory_space<vmem>>, vector<16x32xf32>,
    return
  }
}

</mosaic_0001>

<llo_original>
// kernel: graph_encoder_layer.1
$region0: #{graph_encoder_layer.1}
  #allocation0 [shape = 'u32[]', space=smem, size = 0x4, offset = 0x4, fixed_abs, tag = 'smem constant byte address 0x4 - core index']
  #allocation1 [shape = 'u32[144,128]{1,0:T(1,128)}', space=vmem, size = 0x12000, scoped, tag = 'internal scratch']
  %s0 = inlined_call_operand.vmem [shape: f32[16,96], index: 0, kind: input, shape index: {}]
  %s1 = inlined_call_operand.hbm [shape: f32[232,128], index: 1, kind: input, shape index: {}]
  %s2 = inlined_call_operand.hbm [shape: f32[16,32], index: 2, kind: output, shape index: {}]
  %s3 = sld [smem:[#allocation0]]
  $region22: #{graph_encoder_layer.1} parent=0
    _
  %s5 = ssub.s32 1, %s3
  %s6 = scalar_select 0, %s5, %s3
  $region1: #{graph_encoder_layer.1} parent=0
    #allocation2 [shape = 'u8[118784]{0}', space=vmem, size = 0x1d000, scoped, tag = 'input window, operand 1, single buffered']
    #allocation3 [shape = 's32[1]{0}', space=sflag, size = 0x4, scoped, tag = 'scoped memory for graph_encoder_layer.1']
    #allocation4 [shape = 's32[1]{0}', space=sflag, size = 0x4, scoped, tag = 'scoped memory for graph_encoder_layer.1']
    #allocation5 [shape = 'u8[8192]{0}', space=vmem, size = 0x2000, scoped, tag = 'output window, operand 0, single buffered']
    %7 = vsyncpa [#allocation3], 0
    %8 = vsyncpa [#allocation4], 0
    // Predicated region
    $region2: #{graph_encoder_layer.1} parent=1 // pred_check
      _
    $region3: #{graph_encoder_layer.1} parent=1 // pred_check_branch
      %10 = sbr.rel (0) target = $region5
    $region4: #{graph_encoder_layer.1} parent=1 // pred_region
      _
    $region5: #{graph_encoder_layer.1} parent=1 // pred_fallthru
      _
    // Predicated region
    $region6: #{graph_encoder_layer.1} parent=1 // pred_check
      _
    $region7: #{graph_encoder_layer.1} parent=1 // pred_check_branch
      %12 = sbr.rel (0) target = $region9
    $region8: #{graph_encoder_layer.1} parent=1 // pred_region
      %s14 = ssub.s32 3712, 3712
      %15 = vsyncadd [#allocation3], %s14
      %s16 = sshll.u32 [#allocation2], 4
      %s17 = int_to_ptr.vmem [resolvable:$true] %s16
      %22 = dma.hbm_to_vmem [thread:$0]  %s1, 3712, %s17, [#allocation3], 128, 128, 8
    $region9: #{graph_encoder_layer.1} parent=1 // pred_fallthru
      _
    // Predicated region
    $region10: #{graph_encoder_layer.1} parent=1 // pred_check
      _
    $region11: #{graph_encoder_layer.1} parent=1 // pred_check_branch
      %24 = sbr.rel (0) target = $region13
    $region12: #{graph_encoder_layer.1} parent=1 // pred_region
      %25 = dma.done [#allocation3], 3712
    $region13: #{graph_encoder_layer.1} parent=1 // pred_fallthru
      _
    %v26 = vld [vmem:[%s0] sm:$0xff]
    %v27 = vld [vmem:[%s0 + $0x8] sm:$0xff]
    %v28 = vld [vmem:[#allocation2 + $0xe0] sm:$0xff]
    %v29 = vld [vmem:[#allocation2] sm:$0xff]
    %v30 = vld [vmem:[#allocation2 + $0x8] sm:$0xff]
    %v31 = vld [vmem:[#allocation2 + $0x10] sm:$0xff]
    %v32 = vld [vmem:[#allocation2 + $0x18] sm:$0xff]
    %v33 = vld [vmem:[#allocation2 + $0x20] sm:$0xff]
    %v34 = vld [vmem:[#allocation2 + $0x28] sm:$0xff]
    %v35 = vld [vmem:[#allocation2 + $0x30] sm:$0xff]
    %v36 = vld [vmem:[#allocation2 + $0x38] sm:$0xff]
    %v37 = vld [vmem:[#allocation2 + $0x40] sm:$0xff]
    %v38 = vld [vmem:[#allocation2 + $0x48] sm:$0xff]
    %v39 = vld [vmem:[#allocation2 + $0x50] sm:$0xff]
    %v40 = vld [vmem:[#allocation2 + $0x58] sm:$0xff]
    %v41 = vlaneseq
    %v42 = vshrl.u32 %v41, 7
    %v43 = vsub.s32 0, %v42
    %v44 = vrot.slane %v28, %v43
    %vm45 = vcmask 785408
    %v47 = vsel %vm45, %v26, 0
    %v50 = vsel %vm45, %v27, 0
    %52 = vmatprep.subr.mxu0 0.0
    %53 = vmatpush1.msra.mxu0 0.0
    %54 = vmatprep.subr.mxu0 0.0
    %55 = vmatpush1.msra.mxu0 0.0
    %56 = vmatprep.subr.mxu0 0.0
    %57 = vmatpush1.msra.mxu0 0.0
    %58 = vmatprep.subr.mxu0 0.0
    %59 = vmatpush1.msra.mxu0 0.0
    %60 = vmatprep.subr.mxu0 0.0
    %61 = vmatpush1.msra.mxu0 %v40
    %62 = vmatprep.subr.mxu0 0.0
    %63 = vmatpush1.msra.mxu0 %v39
    %64 = vmatprep.subr.mxu0 0.0
    %65 = vmatpush1.msra.mxu0 %v38
    %66 = vmatprep.subr.mxu0 0.0
    %67 = vmatpush1.msra.mxu0 %v37
    %68 = vmatprep.subr.mxu0 0.0
    %69 = vmatpush1.msra.mxu0 %v36
    %70 = vmatprep.subr.mxu0 0.0
    %71 = vmatpush1.msra.mxu0 %v35
    %72 = vmatprep.subr.mxu0 0.0
    %73 = vmatpush1.msra.mxu0 %v34
    %74 = vmatprep.subr.mxu0 0.0
    %75 = vmatpush1.msra.mxu0 %v33
    %76 = vmatprep.subr.mxu0 0.0
    %77 = vmatpush1.msra.mxu0 %v32
    %78 = vmatprep.subr.mxu0 0.0
    %79 = vmatpush1.msra.mxu0 %v31
    %80 = vmatprep.subr.mxu0 0.0
    %81 = vmatpush1.msra.mxu0 %v30
    %82 = vmatprep.subr.mxu0 0.0
    %83 = vmatpush1.msra.mxu0 %v29
    %84 = vmatprep.subr.mxu0 0.0
    %85 = vmatpush2.msra.mxu0 0.0
    %86 = vmatprep.subr.mxu0 0.0
    %87 = vmatpush2.msra.mxu0 0.0
    %88 = vmatprep.subr.mxu0 0.0
    %89 = vmatpush2.msra.mxu0 0.0
    %90 = vmatprep.subr.mxu0 0.0
    %91 = vmatpush2.msra.mxu0 0.0
    %92 = vmatprep.subr.mxu0 0.0
    %93 = vmatpush2.msra.mxu0 0.0
    %94 = vmatprep.subr.mxu0 0.0
    %95 = vmatpush2.msra.mxu0 0.0
    %96 = vmatprep.subr.mxu0 0.0
    %97 = vmatpush2.msra.mxu0 0.0
    %98 = vmatprep.subr.mxu0 0.0
    %99 = vmatpush2.msra.mxu0 0.0
    %100 = vmatprep.subr.mxu0 0.0
    %101 = vmatpush2.msra.mxu0 0.0
    %102 = vmatprep.subr.mxu0 0.0
    %103 = vmatpush2.msra.mxu0 0.0
    %104 = vmatprep.subr.mxu0 0.0
    %105 = vmatpush2.msra.mxu0 0.0
    %106 = vmatprep.subr.mxu0 0.0
    %107 = vmatpush2.msra.mxu0 0.0
    %108 = vmatprep.subr.mxu0 0.0
    %109 = vmatpush2.msra.mxu0 0.0
    %110 = vmatprep.subr.mxu0 0.0
    %111 = vmatpush2.msra.mxu0 0.0
    %112 = vmatprep.subr.mxu0 0.0
    %113 = vmatpush2.msra.mxu0 0.0
    %114 = vmatprep.subr.mxu0 0.0
    %115 = vmatpush2.msra.mxu0 0.0
    %116 = vmatprep.mubr.f32.mxu0 0.0
    %117 = vmatmul.mubr.f32.gmra.mxu0 %v47
    %v118 = vpop.f32.mrf.mxu0
    %v119 = vadd.f32 %v44, %v118
    %v120 = vpop.f32.mrf.mxu0
    %121 = vmatprep.mubr.f32.mxu0 0.0
    %122 = vmatmul.mubr.f32.gmra.mxu0 %v50
    %v123 = vpop.f32.mrf.mxu0
    %v124 = vadd.f32 %v44, %v123
    %v125 = vpop.f32.mrf.mxu0
    %126 = vdwg.mxu0
    %129 = vrot.lane.b32.xlu0 %v119, 96
    %v130 = vpop.permute.xlu0 %129
    %131 = vrot.lane.b32.xlu0 %v124, 96
    %v132 = vpop.permute.xlu0 %131
    %133 = vrot.lane.b32.xlu0 %v119, 64
    %v134 = vpop.permute.xlu0 %133
    %135 = vrot.lane.b32.xlu0 %v124, 64
    %v136 = vpop.permute.xlu0 %135
    %137 = vrot.lane.b32.xlu0 %v119, 32
    %v138 = vpop.permute.xlu0 %137
    %139 = vrot.lane.b32.xlu0 %v124, 32
    %v140 = vpop.permute.xlu0 %139
    %141 = vrot.lane.b32.xlu0 %v119, 120
    %v142 = vpop.permute.xlu0 %141
    %vm143 = vcmask 64512
    %v144 = vsel %vm143, %v119, 0
    %v146 = vsel %vm143, %v142, 0
    %148 = vmatprep.subr.mxu0 0.0
    %149 = vmatpush1.xpose.msra.mxu0 0.0
    %150 = vmatprep.subr.mxu0 0.0
    %151 = vmatpush1.xpose.msra.mxu0 0.0
    %152 = vmatprep.subr.mxu0 0.0
    %153 = vmatpush1.xpose.msra.mxu0 0.0
    %154 = vmatprep.subr.mxu0 0.0
    %155 = vmatpush1.xpose.msra.mxu0 0.0
    %156 = vmatprep.subr.mxu0 0.0
    %157 = vmatpush1.xpose.msra.mxu0 0.0
    %158 = vmatprep.subr.mxu0 0.0
    %159 = vmatpush1.xpose.msra.mxu0 0.0
    %160 = vmatprep.subr.mxu0 0.0
    %161 = vmatpush1.xpose.msra.mxu0 0.0
    %162 = vmatprep.subr.mxu0 0.0
    %163 = vmatpush1.xpose.msra.mxu0 0.0
    %164 = vmatprep.subr.mxu0 0.0
    %165 = vmatpush1.xpose.msra.mxu0 0.0
    %166 = vmatprep.subr.mxu0 0.0
    %167 = vmatpush1.xpose.msra.mxu0 0.0
    %168 = vmatprep.subr.mxu0 0.0
    %169 = vmatpush1.xpose.msra.mxu0 0.0
    %170 = vmatprep.subr.mxu0 0.0
    %171 = vmatpush1.xpose.msra.mxu0 0.0
    %172 = vmatprep.subr.mxu0 0.0
    %173 = vmatpush1.xpose.msra.mxu0 0.0
    %174 = vmatprep.subr.mxu0 0.0
    %175 = vmatpush1.xpose.msra.mxu0 0.0
    %176 = vmatprep.subr.mxu0 0.0
    %177 = vmatpush1.xpose.msra.mxu0 0.0
    %178 = vmatprep.subr.mxu0 0.0
    %179 = vmatpush1.xpose.msra.mxu0 %v146
    %180 = vmatprep.subr.mxu0 0.0
    %181 = vmatpush2.xpose.msra.mxu0 0.0
    %182 = vmatprep.subr.mxu0 0.0
    %183 = vmatpush2.xpose.msra.mxu0 0.0
    %184 = vmatprep.subr.mxu0 0.0
    %185 = vmatpush2.xpose.msra.mxu0 0.0
    %186 = vmatprep.subr.mxu0 0.0
    %187 = vmatpush2.xpose.msra.mxu0 0.0
    %188 = vmatprep.subr.mxu0 0.0
    %189 = vmatpush2.xpose.msra.mxu0 0.0
    %190 = vmatprep.subr.mxu0 0.0
    %191 = vmatpush2.xpose.msra.mxu0 0.0
    %192 = vmatprep.subr.mxu0 0.0
    %193 = vmatpush2.xpose.msra.mxu0 0.0
    %194 = vmatprep.subr.mxu0 0.0
    %195 = vmatpush2.xpose.msra.mxu0 0.0
    %196 = vmatprep.subr.mxu0 0.0
    %197 = vmatpush2.xpose.msra.mxu0 0.0
    %198 = vmatprep.subr.mxu0 0.0
    %199 = vmatpush2.xpose.msra.mxu0 0.0
    %200 = vmatprep.subr.mxu0 0.0
    %201 = vmatpush2.xpose.msra.mxu0 0.0
    %202 = vmatprep.subr.mxu0 0.0
    %203 = vmatpush2.xpose.msra.mxu0 0.0
    %204 = vmatprep.subr.mxu0 0.0
    %205 = vmatpush2.xpose.msra.mxu0 0.0
    %206 = vmatprep.subr.mxu0 0.0
    %207 = vmatpush2.xpose.msra.mxu0 0.0
    %208 = vmatprep.subr.mxu0 0.0
    %209 = vmatpush2.xpose.msra.mxu0 0.0
    %210 = vmatprep.subr.mxu0 0.0
    %211 = vmatpush2.xpose.msra.mxu0 0.0
    %212 = vmatprep.mubr.f32.mxu0 0.0
    %213 = vmatmul.mubr.f32.gmra.mxu0 %v144
    %v214 = vpop.f32.mrf.mxu0
    %v215 = vadd.f32 0.0, %v214
    %v216 = vpop.f32.mrf.mxu0
    %217 = vdwg.mxu0
    %218 = vrot.lane.b32.xlu0 %v124, 120
    %v219 = vpop.permute.xlu0 %218
    %v220 = vsel %vm143, %v124, 0
    %v222 = vsel %vm143, %v219, 0
    %224 = vmatprep.subr.mxu0 0.0
    %225 = vmatpush1.xpose.msra.mxu0 0.0
    %226 = vmatprep.subr.mxu0 0.0
    %227 = vmatpush1.xpose.msra.mxu0 0.0
    %228 = vmatprep.subr.mxu0 0.0
    %229 = vmatpush1.xpose.msra.mxu0 0.0
    %230 = vmatprep.subr.mxu0 0.0
    %231 = vmatpush1.xpose.msra.mxu0 0.0
    %232 = vmatprep.subr.mxu0 0.0
    %233 = vmatpush1.xpose.msra.mxu0 0.0
    %234 = vmatprep.subr.mxu0 0.0
    %235 = vmatpush1.xpose.msra.mxu0 0.0
    %236 = vmatprep.subr.mxu0 0.0
    %237 = vmatpush1.xpose.msra.mxu0 0.0
    %238 = vmatprep.subr.mxu0 0.0
    %239 = vmatpush1.xpose.msra.mxu0 0.0
    %240 = vmatprep.subr.mxu0 0.0
    %241 = vmatpush1.xpose.msra.mxu0 0.0
    %242 = vmatprep.subr.mxu0 0.0
    %243 = vmatpush1.xpose.msra.mxu0 0.0
    %244 = vmatprep.subr.mxu0 0.0
    %245 = vmatpush1.xpose.msra.mxu0 0.0
    %246 = vmatprep.subr.mxu0 0.0
    %247 = vmatpush1.xpose.msra.mxu0 0.0
    %248 = vmatprep.subr.mxu0 0.0
    %249 = vmatpush1.xpose.msra.mxu0 0.0
    %250 = vmatprep.subr.mxu0 0.0
    %251 = vmatpush1.xpose.msra.mxu0 0.0
    %252 = vmatprep.subr.mxu0 0.0
    %253 = vmatpush1.xpose.msra.mxu0 0.0
    %254 = vmatprep.subr.mxu0 0.0
    %255 = vmatpush1.xpose.msra.mxu0 %v222
    %256 = vmatprep.subr.mxu0 0.0
    %257 = vmatpush2.xpose.msra.mxu0 0.0
    %258 = vmatprep.subr.mxu0 0.0
    %259 = vmatpush2.xpose.msra.mxu0 0.0
    %260 = vmatprep.subr.mxu0 0.0
    %261 = vmatpush2.xpose.msra.mxu0 0.0
    %262 = vmatprep.subr.mxu0 0.0
    %263 = vmatpush2.xpose.msra.mxu0 0.0
    %264 = vmatprep.subr.mxu0 0.0
    %265 = vmatpush2.xpose.msra.mxu0 0.0
    %266 = vmatprep.subr.mxu0 0.0
    %267 = vmatpush2.xpose.msra.mxu0 0.0
    %268 = vmatprep.subr.mxu0 0.0
    %269 = vmatpush2.xpose.msra.mxu0 0.0
    %270 = vmatprep.subr.mxu0 0.0
    %271 = vmatpush2.xpose.msra.mxu0 0.0
    %272 = vmatprep.subr.mxu0 0.0
    %273 = vmatpush2.xpose.msra.mxu0 0.0
    %274 = vmatprep.subr.mxu0 0.0
    %275 = vmatpush2.xpose.msra.mxu0 0.0
    %276 = vmatprep.subr.mxu0 0.0
    %277 = vmatpush2.xpose.msra.mxu0 0.0
    %278 = vmatprep.subr.mxu0 0.0
    %279 = vmatpush2.xpose.msra.mxu0 0.0
    %280 = vmatprep.subr.mxu0 0.0
    %281 = vmatpush2.xpose.msra.mxu0 0.0
    %282 = vmatprep.subr.mxu0 0.0
    %283 = vmatpush2.xpose.msra.mxu0 0.0
    %284 = vmatprep.subr.mxu0 0.0
    %285 = vmatpush2.xpose.msra.mxu0 0.0
    %286 = vmatprep.subr.mxu0 0.0
    %287 = vmatpush2.xpose.msra.mxu0 0.0
    %288 = vmatprep.mubr.f32.mxu0 0.0
    %289 = vmatmul.mubr.f32.gmra.mxu0 %v220
    %v290 = vpop.f32.mrf.mxu0
    %v291 = vadd.f32 0.0, %v290
    %v292 = vpop.f32.mrf.mxu0
    %293 = vdwg.mxu0
    %294 = vrot.lane.b32.xlu0 %v130, 120
    %v295 = vpop.permute.xlu0 %294
    %v296 = vsel %vm143, %v130, 0
    %v298 = vsel %vm143, %v295, 0
    %300 = vmatprep.subr.mxu0 0.0
    %301 = vmatpush1.xpose.msra.mxu0 0.0
    %302 = vmatprep.subr.mxu0 0.0
    %303 = vmatpush1.xpose.msra.mxu0 0.0
    %304 = vmatprep.subr.mxu0 0.0
    %305 = vmatpush1.xpose.msra.mxu0 0.0
    %306 = vmatprep.subr.mxu0 0.0
    %307 = vmatpush1.xpose.msra.mxu0 0.0
    %308 = vmatprep.subr.mxu0 0.0
    %309 = vmatpush1.xpose.msra.mxu0 0.0
    %310 = vmatprep.subr.mxu0 0.0
    %311 = vmatpush1.xpose.msra.mxu0 0.0
    %312 = vmatprep.subr.mxu0 0.0
    %313 = vmatpush1.xpose.msra.mxu0 0.0
    %314 = vmatprep.subr.mxu0 0.0
    %315 = vmatpush1.xpose.msra.mxu0 0.0
    %316 = vmatprep.subr.mxu0 0.0
    %317 = vmatpush1.xpose.msra.mxu0 0.0
    %318 = vmatprep.subr.mxu0 0.0
    %319 = vmatpush1.xpose.msra.mxu0 0.0
    %320 = vmatprep.subr.mxu0 0.0
    %321 = vmatpush1.xpose.msra.mxu0 0.0
    %322 = vmatprep.subr.mxu0 0.0
    %323 = vmatpush1.xpose.msra.mxu0 0.0
    %324 = vmatprep.subr.mxu0 0.0
    %325 = vmatpush1.xpose.msra.mxu0 0.0
    %326 = vmatprep.subr.mxu0 0.0
    %327 = vmatpush1.xpose.msra.mxu0 0.0
    %328 = vmatprep.subr.mxu0 0.0
    %329 = vmatpush1.xpose.msra.mxu0 0.0
    %330 = vmatprep.subr.mxu0 0.0
    %331 = vmatpush1.xpose.msra.mxu0 %v298
    %332 = vmatprep.subr.mxu0 0.0
    %333 = vmatpush2.xpose.msra.mxu0 0.0
    %334 = vmatprep.subr.mxu0 0.0
    %335 = vmatpush2.xpose.msra.mxu0 0.0
    %336 = vmatprep.subr.mxu0 0.0
    %337 = vmatpush2.xpose.msra.mxu0 0.0
    %338 = vmatprep.subr.mxu0 0.0
    %339 = vmatpush2.xpose.msra.mxu0 0.0
    %340 = vmatprep.subr.mxu0 0.0
    %341 = vmatpush2.xpose.msra.mxu0 0.0
    %342 = vmatprep.subr.mxu0 0.0
    %343 = vmatpush2.xpose.msra.mxu0 0.0
    %344 = vmatprep.subr.mxu0 0.0
    %345 = vmatpush2.xpose.msra.mxu0 0.0
    %346 = vmatprep.subr.mxu0 0.0
    %347 = vmatpush2.xpose.msra.mxu0 0.0
    %348 = vmatprep.subr.mxu0 0.0
    %349 = vmatpush2.xpose.msra.mxu0 0.0
    %350 = vmatprep.subr.mxu0 0.0
    %351 = vmatpush2.xpose.msra.mxu0 0.0
    %352 = vmatprep.subr.mxu0 0.0
    %353 = vmatpush2.xpose.msra.mxu0 0.0
    %354 = vmatprep.subr.mxu0 0.0
    %355 = vmatpush2.xpose.msra.mxu0 0.0
    %356 = vmatprep.subr.mxu0 0.0
    %357 = vmatpush2.xpose.msra.mxu0 0.0
    %358 = vmatprep.subr.mxu0 0.0
    %359 = vmatpush2.xpose.msra.mxu0 0.0
    %360 = vmatprep.subr.mxu0 0.0
    %361 = vmatpush2.xpose.msra.mxu0 0.0
    %362 = vmatprep.subr.mxu0 0.0
    %363 = vmatpush2.xpose.msra.mxu0 0.0
    %364 = vmatprep.mubr.f32.mxu0 0.0
    %365 = vmatmul.mubr.f32.gmra.mxu0 %v296
    %v366 = vpop.f32.mrf.mxu0
    %v367 = vadd.f32 0.0, %v366
    %v368 = vpop.f32.mrf.mxu0
    %369 = vdwg.mxu0
    %370 = vrot.lane.b32.xlu0 %v132, 120
    %v371 = vpop.permute.xlu0 %370
    %v372 = vsel %vm143, %v132, 0
    %v374 = vsel %vm143, %v371, 0
    %376 = vmatprep.subr.mxu0 0.0
    %377 = vmatpush1.xpose.msra.mxu0 0.0
    %378 = vmatprep.subr.mxu0 0.0
    %379 = vmatpush1.xpose.msra.mxu0 0.0
    %380 = vmatprep.subr.mxu0 0.0
    %381 = vmatpush1.xpose.msra.mxu0 0.0
    %382 = vmatprep.subr.mxu0 0.0
    %383 = vmatpush1.xpose.msra.mxu0 0.0
    %384 = vmatprep.subr.mxu0 0.0
    %385 = vmatpush1.xpose.msra.mxu0 0.0
    %386 = vmatprep.subr.mxu0 0.0
    %387 = vmatpush1.xpose.msra.mxu0 0.0
    %388 = vmatprep.subr.mxu0 0.0
    %389 = vmatpush1.xpose.msra.mxu0 0.0
    %390 = vmatprep.subr.mxu0 0.0
    %391 = vmatpush1.xpose.msra.mxu0 0.0
    %392 = vmatprep.subr.mxu0 0.0
    %393 = vmatpush1.xpose.msra.mxu0 0.0
    %394 = vmatprep.subr.mxu0 0.0
    %395 = vmatpush1.xpose.msra.mxu0 0.0
    %396 = vmatprep.subr.mxu0 0.0
    %397 = vmatpush1.xpose.msra.mxu0 0.0
    %398 = vmatprep.subr.mxu0 0.0
    %399 = vmatpush1.xpose.msra.mxu0 0.0
    %400 = vmatprep.subr.mxu0 0.0
    %401 = vmatpush1.xpose.msra.mxu0 0.0
    %402 = vmatprep.subr.mxu0 0.0
    %403 = vmatpush1.xpose.msra.mxu0 0.0
    %404 = vmatprep.subr.mxu0 0.0
    %405 = vmatpush1.xpose.msra.mxu0 0.0
    %406 = vmatprep.subr.mxu0 0.0
    %407 = vmatpush1.xpose.msra.mxu0 %v374
    %408 = vmatprep.subr.mxu0 0.0
    %409 = vmatpush2.xpose.msra.mxu0 0.0
    %410 = vmatprep.subr.mxu0 0.0
    %411 = vmatpush2.xpose.msra.mxu0 0.0
    %412 = vmatprep.subr.mxu0 0.0
    %413 = vmatpush2.xpose.msra.mxu0 0.0
    %414 = vmatprep.subr.mxu0 0.0
    %415 = vmatpush2.xpose.msra.mxu0 0.0
    %416 = vmatprep.subr.mxu0 0.0
    %417 = vmatpush2.xpose.msra.mxu0 0.0
    %418 = vmatprep.subr.mxu0 0.0
    %419 = vmatpush2.xpose.msra.mxu0 0.0
    %420 = vmatprep.subr.mxu0 0.0
    %421 = vmatpush2.xpose.msra.mxu0 0.0
    %422 = vmatprep.subr.mxu0 0.0
    %423 = vmatpush2.xpose.msra.mxu0 0.0
    %424 = vmatprep.subr.mxu0 0.0
    %425 = vmatpush2.xpose.msra.mxu0 0.0
    %426 = vmatprep.subr.mxu0 0.0
    %427 = vmatpush2.xpose.msra.mxu0 0.0
    %428 = vmatprep.subr.mxu0 0.0
    %429 = vmatpush2.xpose.msra.mxu0 0.0
    %430 = vmatprep.subr.mxu0 0.0
    %431 = vmatpush2.xpose.msra.mxu0 0.0
    %432 = vmatprep.subr.mxu0 0.0
    %433 = vmatpush2.xpose.msra.mxu0 0.0
    %434 = vmatprep.subr.mxu0 0.0
    %435 = vmatpush2.xpose.msra.mxu0 0.0
    %436 = vmatprep.subr.mxu0 0.0
    %437 = vmatpush2.xpose.msra.mxu0 0.0
    %438 = vmatprep.subr.mxu0 0.0
    %439 = vmatpush2.xpose.msra.mxu0 0.0
    %440 = vmatprep.mubr.f32.mxu0 0.0
    %441 = vmatmul.mubr.f32.gmra.mxu0 %v372
    %v442 = vpop.f32.mrf.mxu0
    %v443 = vadd.f32 0.0, %v442
    %v444 = vpop.f32.mrf.mxu0
    %445 = vdwg.mxu0
    %446 = vrot.lane.b32.xlu0 %v134, 120
    %v447 = vpop.permute.xlu0 %446
    %v448 = vsel %vm143, %v134, 0
    %v450 = vsel %vm143, %v447, 0
    %452 = vmatprep.subr.mxu0 0.0
    %453 = vmatpush1.xpose.msra.mxu0 0.0
    %454 = vmatprep.subr.mxu0 0.0
    %455 = vmatpush1.xpose.msra.mxu0 0.0
    %456 = vmatprep.subr.mxu0 0.0
    %457 = vmatpush1.xpose.msra.mxu0 0.0
    %458 = vmatprep.subr.mxu0 0.0
    %459 = vmatpush1.xpose.msra.mxu0 0.0
    %460 = vmatprep.subr.mxu0 0.0
    %461 = vmatpush1.xpose.msra.mxu0 0.0
    %462 = vmatprep.subr.mxu0 0.0
    %463 = vmatpush1.xpose.msra.mxu0 0.0
    %464 = vmatprep.subr.mxu0 0.0
    %465 = vmatpush1.xpose.msra.mxu0 0.0
    %466 = vmatprep.subr.mxu0 0.0
    %467 = vmatpush1.xpose.msra.mxu0 0.0
    %468 = vmatprep.subr.mxu0 0.0
    %469 = vmatpush1.xpose.msra.mxu0 0.0
    %470 = vmatprep.subr.mxu0 0.0
    %471 = vmatpush1.xpose.msra.mxu0 0.0
    %472 = vmatprep.subr.mxu0 0.0
    %473 = vmatpush1.xpose.msra.mxu0 0.0
    %474 = vmatprep.subr.mxu0 0.0
    %475 = vmatpush1.xpose.msra.mxu0 0.0
    %476 = vmatprep.subr.mxu0 0.0
    %477 = vmatpush1.xpose.msra.mxu0 0.0
    %478 = vmatprep.subr.mxu0 0.0
    %479 = vmatpush1.xpose.msra.mxu0 0.0
    %480 = vmatprep.subr.mxu0 0.0
    %481 = vmatpush1.xpose.msra.mxu0 0.0
    %482 = vmatprep.subr.mxu0 0.0
    %483 = vmatpush1.xpose.msra.mxu0 %v450
    %484 = vmatprep.subr.mxu0 0.0
    %485 = vmatpush2.xpose.msra.mxu0 0.0
    %486 = vmatprep.subr.mxu0 0.0
    %487 = vmatpush2.xpose.msra.mxu0 0.0
    %488 = vmatprep.subr.mxu0 0.0
    %489 = vmatpush2.xpose.msra.mxu0 0.0
    %490 = vmatprep.subr.mxu0 0.0
    %491 = vmatpush2.xpose.msra.mxu0 0.0
    %492 = vmatprep.subr.mxu0 0.0
    %493 = vmatpush2.xpose.msra.mxu0 0.0
    %494 = vmatprep.subr.mxu0 0.0
    %495 = vmatpush2.xpose.msra.mxu0 0.0
    %496 = vmatprep.subr.mxu0 0.0
    %497 = vmatpush2.xpose.msra.mxu0 0.0
    %498 = vmatprep.subr.mxu0 0.0
    %499 = vmatpush2.xpose.msra.mxu0 0.0
    %500 = vmatprep.subr.mxu0 0.0
    %501 = vmatpush2.xpose.msra.mxu0 0.0
    %502 = vmatprep.subr.mxu0 0.0
    %503 = vmatpush2.xpose.msra.mxu0 0.0
    %504 = vmatprep.subr.mxu0 0.0
    %505 = vmatpush2.xpose.msra.mxu0 0.0
    %506 = vmatprep.subr.mxu0 0.0
    %507 = vmatpush2.xpose.msra.mxu0 0.0
    %508 = vmatprep.subr.mxu0 0.0
    %509 = vmatpush2.xpose.msra.mxu0 0.0
    %510 = vmatprep.subr.mxu0 0.0
    %511 = vmatpush2.xpose.msra.mxu0 0.0
    %512 = vmatprep.subr.mxu0 0.0
    %513 = vmatpush2.xpose.msra.mxu0 0.0
    %514 = vmatprep.subr.mxu0 0.0
    %515 = vmatpush2.xpose.msra.mxu0 0.0
    %516 = vmatprep.mubr.f32.mxu0 0.0
    %517 = vmatmul.mubr.f32.gmra.mxu0 %v448
    %v518 = vpop.f32.mrf.mxu0
    %v519 = vadd.f32 0.0, %v518
    %v520 = vpop.f32.mrf.mxu0
    %521 = vdwg.mxu0
    %522 = vrot.lane.b32.xlu0 %v136, 120
    %v523 = vpop.permute.xlu0 %522
    %v524 = vsel %vm143, %v136, 0
    %v526 = vsel %vm143, %v523, 0
    %528 = vmatprep.subr.mxu0 0.0
    %529 = vmatpush1.xpose.msra.mxu0 0.0
    %530 = vmatprep.subr.mxu0 0.0
    %531 = vmatpush1.xpose.msra.mxu0 0.0
    %532 = vmatprep.subr.mxu0 0.0
    %533 = vmatpush1.xpose.msra.mxu0 0.0
    %534 = vmatprep.subr.mxu0 0.0
    %535 = vmatpush1.xpose.msra.mxu0 0.0
    %536 = vmatprep.subr.mxu0 0.0
    %537 = vmatpush1.xpose.msra.mxu0 0.0
    %538 = vmatprep.subr.mxu0 0.0
    %539 = vmatpush1.xpose.msra.mxu0 0.0
    %540 = vmatprep.subr.mxu0 0.0
    %541 = vmatpush1.xpose.msra.mxu0 0.0
    %542 = vmatprep.subr.mxu0 0.0
    %543 = vmatpush1.xpose.msra.mxu0 0.0
    %544 = vmatprep.subr.mxu0 0.0
    %545 = vmatpush1.xpose.msra.mxu0 0.0
    %546 = vmatprep.subr.mxu0 0.0
    %547 = vmatpush1.xpose.msra.mxu0 0.0
    %548 = vmatprep.subr.mxu0 0.0
    %549 = vmatpush1.xpose.msra.mxu0 0.0
    %550 = vmatprep.subr.mxu0 0.0
    %551 = vmatpush1.xpose.msra.mxu0 0.0
    %552 = vmatprep.subr.mxu0 0.0
    %553 = vmatpush1.xpose.msra.mxu0 0.0
    %554 = vmatprep.subr.mxu0 0.0
    %555 = vmatpush1.xpose.msra.mxu0 0.0
    %556 = vmatprep.subr.mxu0 0.0
    %557 = vmatpush1.xpose.msra.mxu0 0.0
    %558 = vmatprep.subr.mxu0 0.0
    %559 = vmatpush1.xpose.msra.mxu0 %v526
    %560 = vmatprep.subr.mxu0 0.0
    %561 = vmatpush2.xpose.msra.mxu0 0.0
    %562 = vmatprep.subr.mxu0 0.0
    %563 = vmatpush2.xpose.msra.mxu0 0.0
    %564 = vmatprep.subr.mxu0 0.0
    %565 = vmatpush2.xpose.msra.mxu0 0.0
    %566 = vmatprep.subr.mxu0 0.0
    %567 = vmatpush2.xpose.msra.mxu0 0.0
    %568 = vmatprep.subr.mxu0 0.0
    %569 = vmatpush2.xpose.msra.mxu0 0.0
    %570 = vmatprep.subr.mxu0 0.0
    %571 = vmatpush2.xpose.msra.mxu0 0.0
    %572 = vmatprep.subr.mxu0 0.0
    %573 = vmatpush2.xpose.msra.mxu0 0.0
    %574 = vmatprep.subr.mxu0 0.0
    %575 = vmatpush2.xpose.msra.mxu0 0.0
    %576 = vmatprep.subr.mxu0 0.0
    %577 = vmatpush2.xpose.msra.mxu0 0.0
    %578 = vmatprep.subr.mxu0 0.0
    %579 = vmatpush2.xpose.msra.mxu0 0.0
    %580 = vmatprep.subr.mxu0 0.0
    %581 = vmatpush2.xpose.msra.mxu0 0.0
    %582 = vmatprep.subr.mxu0 0.0
    %583 = vmatpush2.xpose.msra.mxu0 0.0
    %584 = vmatprep.subr.mxu0 0.0
    %585 = vmatpush2.xpose.msra.mxu0 0.0
    %586 = vmatprep.subr.mxu0 0.0
    %587 = vmatpush2.xpose.msra.mxu0 0.0
    %588 = vmatprep.subr.mxu0 0.0
    %589 = vmatpush2.xpose.msra.mxu0 0.0
    %590 = vmatprep.subr.mxu0 0.0
    %591 = vmatpush2.xpose.msra.mxu0 0.0
    %592 = vmatprep.mubr.f32.mxu0 0.0
    %593 = vmatmul.mubr.f32.gmra.mxu0 %v524
    %v594 = vpop.f32.mrf.mxu0
    %v595 = vadd.f32 0.0, %v594
    %v596 = vpop.f32.mrf.mxu0
    %597 = vdwg.mxu0
    %598 = vrot.lane.b32.xlu0 %v138, 120
    %v599 = vpop.permute.xlu0 %598
    %v600 = vsel %vm143, %v138, 0
    %v602 = vsel %vm143, %v599, 0
    %604 = vmatprep.subr.mxu0 0.0
    %605 = vmatpush1.xpose.msra.mxu0 0.0
    %606 = vmatprep.subr.mxu0 0.0
    %607 = vmatpush1.xpose.msra.mxu0 0.0
    %608 = vmatprep.subr.mxu0 0.0
    %609 = vmatpush1.xpose.msra.mxu0 0.0
    %610 = vmatprep.subr.mxu0 0.0
    %611 = vmatpush1.xpose.msra.mxu0 0.0
    %612 = vmatprep.subr.mxu0 0.0
    %613 = vmatpush1.xpose.msra.mxu0 0.0
    %614 = vmatprep.subr.mxu0 0.0
    %615 = vmatpush1.xpose.msra.mxu0 0.0
    %616 = vmatprep.subr.mxu0 0.0
    %617 = vmatpush1.xpose.msra.mxu0 0.0
    %618 = vmatprep.subr.mxu0 0.0
    %619 = vmatpush1.xpose.msra.mxu0 0.0
    %620 = vmatprep.subr.mxu0 0.0
    %621 = vmatpush1.xpose.msra.mxu0 0.0
    %622 = vmatprep.subr.mxu0 0.0
    %623 = vmatpush1.xpose.msra.mxu0 0.0
    %624 = vmatprep.subr.mxu0 0.0
    %625 = vmatpush1.xpose.msra.mxu0 0.0
    %626 = vmatprep.subr.mxu0 0.0
    %627 = vmatpush1.xpose.msra.mxu0 0.0
    %628 = vmatprep.subr.mxu0 0.0
    %629 = vmatpush1.xpose.msra.mxu0 0.0
    %630 = vmatprep.subr.mxu0 0.0
    %631 = vmatpush1.xpose.msra.mxu0 0.0
    %632 = vmatprep.subr.mxu0 0.0
    %633 = vmatpush1.xpose.msra.mxu0 0.0
    %634 = vmatprep.subr.mxu0 0.0
    %635 = vmatpush1.xpose.msra.mxu0 %v602
    %636 = vmatprep.subr.mxu0 0.0
    %637 = vmatpush2.xpose.msra.mxu0 0.0
    %638 = vmatprep.subr.mxu0 0.0
    %639 = vmatpush2.xpose.msra.mxu0 0.0
    %640 = vmatprep.subr.mxu0 0.0
    %641 = vmatpush2.xpose.msra.mxu0 0.0
    %642 = vmatprep.subr.mxu0 0.0
    %643 = vmatpush2.xpose.msra.mxu0 0.0
    %644 = vmatprep.subr.mxu0 0.0
    %645 = vmatpush2.xpose.msra.mxu0 0.0
    %646 = vmatprep.subr.mxu0 0.0
    %647 = vmatpush2.xpose.msra.mxu0 0.0
    %648 = vmatprep.subr.mxu0 0.0
    %649 = vmatpush2.xpose.msra.mxu0 0.0
    %650 = vmatprep.subr.mxu0 0.0
    %651 = vmatpush2.xpose.msra.mxu0 0.0
    %652 = vmatprep.subr.mxu0 0.0
    %653 = vmatpush2.xpose.msra.mxu0 0.0
    %654 = vmatprep.subr.mxu0 0.0
    %655 = vmatpush2.xpose.msra.mxu0 0.0
    %656 = vmatprep.subr.mxu0 0.0
    %657 = vmatpush2.xpose.msra.mxu0 0.0
    %658 = vmatprep.subr.mxu0 0.0
    %659 = vmatpush2.xpose.msra.mxu0 0.0
    %660 = vmatprep.subr.mxu0 0.0
    %661 = vmatpush2.xpose.msra.mxu0 0.0
    %662 = vmatprep.subr.mxu0 0.0
    %663 = vmatpush2.xpose.msra.mxu0 0.0
    %664 = vmatprep.subr.mxu0 0.0
    %665 = vmatpush2.xpose.msra.mxu0 0.0
    %666 = vmatprep.subr.mxu0 0.0
    %667 = vmatpush2.xpose.msra.mxu0 0.0
    %668 = vmatprep.mubr.f32.mxu0 0.0
    %669 = vmatmul.mubr.f32.gmra.mxu0 %v600
    %v670 = vpop.f32.mrf.mxu0
    %v671 = vadd.f32 0.0, %v670
    %v672 = vpop.f32.mrf.mxu0
    %673 = vdwg.mxu0
    %674 = vrot.lane.b32.xlu0 %v140, 120
    %v675 = vpop.permute.xlu0 %674
    %v676 = vsel %vm143, %v140, 0
    %v678 = vsel %vm143, %v675, 0
    %680 = vmatprep.subr.mxu0 0.0
    %681 = vmatpush1.xpose.msra.mxu0 0.0
    %682 = vmatprep.subr.mxu0 0.0
    %683 = vmatpush1.xpose.msra.mxu0 0.0
    %684 = vmatprep.subr.mxu0 0.0
    %685 = vmatpush1.xpose.msra.mxu0 0.0
    %686 = vmatprep.subr.mxu0 0.0
    %687 = vmatpush1.xpose.msra.mxu0 0.0
    %688 = vmatprep.subr.mxu0 0.0
    %689 = vmatpush1.xpose.msra.mxu0 0.0
    %690 = vmatprep.subr.mxu0 0.0
    %691 = vmatpush1.xpose.msra.mxu0 0.0
    %692 = vmatprep.subr.mxu0 0.0
    %693 = vmatpush1.xpose.msra.mxu0 0.0
    %694 = vmatprep.subr.mxu0 0.0
    %695 = vmatpush1.xpose.msra.mxu0 0.0
    %696 = vmatprep.subr.mxu0 0.0
    %697 = vmatpush1.xpose.msra.mxu0 0.0
    %698 = vmatprep.subr.mxu0 0.0
    %699 = vmatpush1.xpose.msra.mxu0 0.0
    %700 = vmatprep.subr.mxu0 0.0
    %701 = vmatpush1.xpose.msra.mxu0 0.0
    %702 = vmatprep.subr.mxu0 0.0
    %703 = vmatpush1.xpose.msra.mxu0 0.0
    %704 = vmatprep.subr.mxu0 0.0
    %705 = vmatpush1.xpose.msra.mxu0 0.0
    %706 = vmatprep.subr.mxu0 0.0
    %707 = vmatpush1.xpose.msra.mxu0 0.0
    %708 = vmatprep.subr.mxu0 0.0
    %709 = vmatpush1.xpose.msra.mxu0 0.0
    %710 = vmatprep.subr.mxu0 0.0
    %711 = vmatpush1.xpose.msra.mxu0 %v678
    %712 = vmatprep.subr.mxu0 0.0
    %713 = vmatpush2.xpose.msra.mxu0 0.0
    %714 = vmatprep.subr.mxu0 0.0
    %715 = vmatpush2.xpose.msra.mxu0 0.0
    %716 = vmatprep.subr.mxu0 0.0
    %717 = vmatpush2.xpose.msra.mxu0 0.0
    %718 = vmatprep.subr.mxu0 0.0
    %719 = vmatpush2.xpose.msra.mxu0 0.0
    %720 = vmatprep.subr.mxu0 0.0
    %721 = vmatpush2.xpose.msra.mxu0 0.0
    %722 = vmatprep.subr.mxu0 0.0
    %723 = vmatpush2.xpose.msra.mxu0 0.0
    %724 = vmatprep.subr.mxu0 0.0
    %725 = vmatpush2.xpose.msra.mxu0 0.0
    %726 = vmatprep.subr.mxu0 0.0
    %727 = vmatpush2.xpose.msra.mxu0 0.0
    %728 = vmatprep.subr.mxu0 0.0
    %729 = vmatpush2.xpose.msra.mxu0 0.0
    %730 = vmatprep.subr.mxu0 0.0
    %731 = vmatpush2.xpose.msra.mxu0 0.0
    %732 = vmatprep.subr.mxu0 0.0
    %733 = vmatpush2.xpose.msra.mxu0 0.0
    %734 = vmatprep.subr.mxu0 0.0
    %735 = vmatpush2.xpose.msra.mxu0 0.0
    %736 = vmatprep.subr.mxu0 0.0
    %737 = vmatpush2.xpose.msra.mxu0 0.0
    %738 = vmatprep.subr.mxu0 0.0
    %739 = vmatpush2.xpose.msra.mxu0 0.0
    %740 = vmatprep.subr.mxu0 0.0
    %741 = vmatpush2.xpose.msra.mxu0 0.0
    %742 = vmatprep.subr.mxu0 0.0
    %743 = vmatpush2.xpose.msra.mxu0 0.0
    %744 = vmatprep.mubr.f32.mxu0 0.0
    %745 = vmatmul.mubr.f32.gmra.mxu0 %v676
    %v746 = vpop.f32.mrf.mxu0
    %v747 = vadd.f32 0.0, %v746
    %v748 = vpop.f32.mrf.mxu0
    %749 = vdwg.mxu0
    %v750 = vmul.f32 %v215, 0.35355338
    %v751 = vmul.f32 %v291, 0.35355338
    %v752 = vmul.f32 %v367, 0.35355338
    %v753 = vmul.f32 %v443, 0.35355338
    %v754 = vmul.f32 %v519, 0.35355338
    %v755 = vmul.f32 %v595, 0.35355338
    %v756 = vmul.f32 %v671, 0.35355338
    %v757 = vmul.f32 %v747, 0.35355338
    %758 = vrot.lane.b32.xlu0 %v119, 104
    %v759 = vpop.permute.xlu0 %758
    %760 = vrot.lane.b32.xlu0 %v124, 104
    %v761 = vpop.permute.xlu0 %760
    %762 = vrot.lane.b32.xlu0 %v130, 104
    %v763 = vpop.permute.xlu0 %762
    %764 = vrot.lane.b32.xlu0 %v132, 104
    %v765 = vpop.permute.xlu0 %764
    %766 = vrot.lane.b32.xlu0 %v134, 104
    %v767 = vpop.permute.xlu0 %766
    %768 = vrot.lane.b32.xlu0 %v136, 104
    %v769 = vpop.permute.xlu0 %768
    %770 = vrot.lane.b32.xlu0 %v138, 104
    %v771 = vpop.permute.xlu0 %770
    %772 = vrot.lane.b32.xlu0 %v140, 104
    %v773 = vpop.permute.xlu0 %772
    %v782 = vadd.f32 %v750, %v759
    %v783 = vadd.f32 %v751, %v761
    %v784 = vadd.f32 %v752, %v763
    %v785 = vadd.f32 %v753, %v765
    %v786 = vadd.f32 %v754, %v767
    %v787 = vadd.f32 %v755, %v769
    %v788 = vadd.f32 %v756, %v771
    %v789 = vadd.f32 %v757, %v773
    %v790 = vsel %vm143, %v782, -inf
    %791 = vmax.xlane.f32.xlu0 %v790
    %v792 = vpop.xlane.xlu0 %791
    %v793 = vsel %vm143, %v783, -inf
    %794 = vmax.xlane.f32.xlu0 %v793
    %v795 = vpop.xlane.xlu0 %794
    %v796 = vsel %vm143, %v784, -inf
    %797 = vmax.xlane.f32.xlu0 %v796
    %v798 = vpop.xlane.xlu0 %797
    %v799 = vsel %vm143, %v785, -inf
    %800 = vmax.xlane.f32.xlu0 %v799
    %v801 = vpop.xlane.xlu0 %800
    %v802 = vsel %vm143, %v786, -inf
    %803 = vmax.xlane.f32.xlu0 %v802
    %v804 = vpop.xlane.xlu0 %803
    %v805 = vsel %vm143, %v787, -inf
    %806 = vmax.xlane.f32.xlu0 %v805
    %v807 = vpop.xlane.xlu0 %806
    %v808 = vsel %vm143, %v788, -inf
    %809 = vmax.xlane.f32.xlu0 %v808
    %v810 = vpop.xlane.xlu0 %809
    %v811 = vsel %vm143, %v789, -inf
    %812 = vmax.xlane.f32.xlu0 %v811
    %v813 = vpop.xlane.xlu0 %812
    %v814 = vsub.f32 %v782, %v792
    %v815 = vsub.f32 %v783, %v795
    %v816 = vsub.f32 %v784, %v798
    %v817 = vsub.f32 %v785, %v801
    %v818 = vsub.f32 %v786, %v804
    %v819 = vsub.f32 %v787, %v807
    %v820 = vsub.f32 %v788, %v810
    %v821 = vsub.f32 %v789, %v813
    %v822 = vmul.f32 %v814, 1.442695
    %v823 = vpow.pop %v822
    %v824 = vmul.f32 %v815, 1.442695
    %v825 = vpow.pop %v824
    %v826 = vmul.f32 %v816, 1.442695
    %v827 = vpow.pop %v826
    %v828 = vmul.f32 %v817, 1.442695
    %v829 = vpow.pop %v828
    %v830 = vmul.f32 %v818, 1.442695
    %v831 = vpow.pop %v830
    %v832 = vmul.f32 %v819, 1.442695
    %v833 = vpow.pop %v832
    %v834 = vmul.f32 %v820, 1.442695
    %v835 = vpow.pop %v834
    %v836 = vmul.f32 %v821, 1.442695
    %v837 = vpow.pop %v836
    %v838 = vsel %vm143, %v823, 0.0
    %839 = vadd.xlane.f32.xlu0 %v838
    %v840 = vpop.xlane.xlu0 %839
    %v841 = vsel %vm143, %v825, 0.0
    %842 = vadd.xlane.f32.xlu0 %v841
    %v843 = vpop.xlane.xlu0 %842
    %v844 = vsel %vm143, %v827, 0.0
    %845 = vadd.xlane.f32.xlu0 %v844
    %v846 = vpop.xlane.xlu0 %845
    %v847 = vsel %vm143, %v829, 0.0
    %848 = vadd.xlane.f32.xlu0 %v847
    %v849 = vpop.xlane.xlu0 %848
    %v850 = vsel %vm143, %v831, 0.0
    %851 = vadd.xlane.f32.xlu0 %v850
    %v852 = vpop.xlane.xlu0 %851
    %v853 = vsel %vm143, %v833, 0.0
    %854 = vadd.xlane.f32.xlu0 %v853
    %v855 = vpop.xlane.xlu0 %854
    %v856 = vsel %vm143, %v835, 0.0
    %857 = vadd.xlane.f32.xlu0 %v856
    %v858 = vpop.xlane.xlu0 %857
    %v859 = vsel %vm143, %v837, 0.0
    %860 = vadd.xlane.f32.xlu0 %v859
    %v861 = vpop.xlane.xlu0 %860
    %862 = vrot.lane.b32.xlu0 %v119, 112
    %v863 = vpop.permute.xlu0 %862
    %v866 = vsel %vm143, %v823, 0
    %868 = vmatprep.subr.mxu0 0.0
    %869 = vmatpush1.msra.mxu0 0.0
    %870 = vmatprep.subr.mxu0 0.0
    %871 = vmatpush1.msra.mxu0 0.0
    %872 = vmatprep.subr.mxu0 0.0
    %873 = vmatpush1.msra.mxu0 0.0
    %874 = vmatprep.subr.mxu0 0.0
    %875 = vmatpush1.msra.mxu0 0.0
    %876 = vmatprep.subr.mxu0 0.0
    %877 = vmatpush1.msra.mxu0 0.0
    %878 = vmatprep.subr.mxu0 0.0
    %879 = vmatpush1.msra.mxu0 0.0
    %880 = vmatprep.subr.mxu0 0.0
    %881 = vmatpush1.msra.mxu0 0.0
    %882 = vmatprep.subr.mxu0 0.0
    %883 = vmatpush1.msra.mxu0 0.0
    %884 = vmatprep.subr.mxu0 0.0
    %885 = vmatpush1.msra.mxu0 0.0
    %886 = vmatprep.subr.mxu0 0.0
    %887 = vmatpush1.msra.mxu0 0.0
    %888 = vmatprep.subr.mxu0 0.0
    %889 = vmatpush1.msra.mxu0 0.0
    %890 = vmatprep.subr.mxu0 0.0
    %891 = vmatpush1.msra.mxu0 0.0
    %892 = vmatprep.subr.mxu0 0.0
    %893 = vmatpush1.msra.mxu0 0.0
    %894 = vmatprep.subr.mxu0 0.0
    %895 = vmatpush1.msra.mxu0 0.0
    %896 = vmatprep.subr.mxu0 0.0
    %897 = vmatpush1.msra.mxu0 0.0
    %898 = vmatprep.subr.mxu0 0.0
    %899 = vmatpush1.msra.mxu0 %v863
    %900 = vmatprep.subr.mxu0 0.0
    %901 = vmatpush2.msra.mxu0 0.0
    %902 = vmatprep.subr.mxu0 0.0
    %903 = vmatpush2.msra.mxu0 0.0
    %904 = vmatprep.subr.mxu0 0.0
    %905 = vmatpush2.msra.mxu0 0.0
    %906 = vmatprep.subr.mxu0 0.0
    %907 = vmatpush2.msra.mxu0 0.0
    %908 = vmatprep.subr.mxu0 0.0
    %909 = vmatpush2.msra.mxu0 0.0
    %910 = vmatprep.subr.mxu0 0.0
    %911 = vmatpush2.msra.mxu0 0.0
    %912 = vmatprep.subr.mxu0 0.0
    %913 = vmatpush2.msra.mxu0 0.0
    %914 = vmatprep.subr.mxu0 0.0
    %915 = vmatpush2.msra.mxu0 0.0
    %916 = vmatprep.subr.mxu0 0.0
    %917 = vmatpush2.msra.mxu0 0.0
    %918 = vmatprep.subr.mxu0 0.0
    %919 = vmatpush2.msra.mxu0 0.0
    %920 = vmatprep.subr.mxu0 0.0
    %921 = vmatpush2.msra.mxu0 0.0
    %922 = vmatprep.subr.mxu0 0.0
    %923 = vmatpush2.msra.mxu0 0.0
    %924 = vmatprep.subr.mxu0 0.0
    %925 = vmatpush2.msra.mxu0 0.0
    %926 = vmatprep.subr.mxu0 0.0
    %927 = vmatpush2.msra.mxu0 0.0
    %928 = vmatprep.subr.mxu0 0.0
    %929 = vmatpush2.msra.mxu0 0.0
    %930 = vmatprep.subr.mxu0 0.0
    %931 = vmatpush2.msra.mxu0 0.0
    %932 = vmatprep.mubr.f32.mxu0 0.0
    %933 = vmatmul.mubr.f32.gmra.mxu0 %v866
    %v934 = vpop.f32.mrf.mxu0
    %v935 = vadd.f32 0.0, %v934
    %v936 = vpop.f32.mrf.mxu0
    %937 = vdwg.mxu0
    %938 = vrot.lane.b32.xlu0 %v124, 112
    %v939 = vpop.permute.xlu0 %938
    %v942 = vsel %vm143, %v825, 0
    %944 = vmatprep.subr.mxu0 0.0
    %945 = vmatpush1.msra.mxu0 0.0
    %946 = vmatprep.subr.mxu0 0.0
    %947 = vmatpush1.msra.mxu0 0.0
    %948 = vmatprep.subr.mxu0 0.0
    %949 = vmatpush1.msra.mxu0 0.0
    %950 = vmatprep.subr.mxu0 0.0
    %951 = vmatpush1.msra.mxu0 0.0
    %952 = vmatprep.subr.mxu0 0.0
    %953 = vmatpush1.msra.mxu0 0.0
    %954 = vmatprep.subr.mxu0 0.0
    %955 = vmatpush1.msra.mxu0 0.0
    %956 = vmatprep.subr.mxu0 0.0
    %957 = vmatpush1.msra.mxu0 0.0
    %958 = vmatprep.subr.mxu0 0.0
    %959 = vmatpush1.msra.mxu0 0.0
    %960 = vmatprep.subr.mxu0 0.0
    %961 = vmatpush1.msra.mxu0 0.0
    %962 = vmatprep.subr.mxu0 0.0
    %963 = vmatpush1.msra.mxu0 0.0
    %964 = vmatprep.subr.mxu0 0.0
    %965 = vmatpush1.msra.mxu0 0.0
    %966 = vmatprep.subr.mxu0 0.0
    %967 = vmatpush1.msra.mxu0 0.0
    %968 = vmatprep.subr.mxu0 0.0
    %969 = vmatpush1.msra.mxu0 0.0
    %970 = vmatprep.subr.mxu0 0.0
    %971 = vmatpush1.msra.mxu0 0.0
    %972 = vmatprep.subr.mxu0 0.0
    %973 = vmatpush1.msra.mxu0 0.0
    %974 = vmatprep.subr.mxu0 0.0
    %975 = vmatpush1.msra.mxu0 %v939
    %976 = vmatprep.subr.mxu0 0.0
    %977 = vmatpush2.msra.mxu0 0.0
    %978 = vmatprep.subr.mxu0 0.0
    %979 = vmatpush2.msra.mxu0 0.0
    %980 = vmatprep.subr.mxu0 0.0
    %981 = vmatpush2.msra.mxu0 0.0
    %982 = vmatprep.subr.mxu0 0.0
    %983 = vmatpush2.msra.mxu0 0.0
    %984 = vmatprep.subr.mxu0 0.0
    %985 = vmatpush2.msra.mxu0 0.0
    %986 = vmatprep.subr.mxu0 0.0
    %987 = vmatpush2.msra.mxu0 0.0
    %988 = vmatprep.subr.mxu0 0.0
    %989 = vmatpush2.msra.mxu0 0.0
    %990 = vmatprep.subr.mxu0 0.0
    %991 = vmatpush2.msra.mxu0 0.0
    %992 = vmatprep.subr.mxu0 0.0
    %993 = vmatpush2.msra.mxu0 0.0
    %994 = vmatprep.subr.mxu0 0.0
    %995 = vmatpush2.msra.mxu0 0.0
    %996 = vmatprep.subr.mxu0 0.0
    %997 = vmatpush2.msra.mxu0 0.0
    %998 = vmatprep.subr.mxu0 0.0
    %999 = vmatpush2.msra.mxu0 0.0
    %1000 = vmatprep.subr.mxu0 0.0
    %1001 = vmatpush2.msra.mxu0 0.0
    %1002 = vmatprep.subr.mxu0 0.0
    %1003 = vmatpush2.msra.mxu0 0.0
    %1004 = vmatprep.subr.mxu0 0.0
    %1005 = vmatpush2.msra.mxu0 0.0
    %1006 = vmatprep.subr.mxu0 0.0
    %1007 = vmatpush2.msra.mxu0 0.0
    %1008 = vmatprep.mubr.f32.mxu0 0.0
    %1009 = vmatmul.mubr.f32.gmra.mxu0 %v942
    %v1010 = vpop.f32.mrf.mxu0
    %v1011 = vadd.f32 0.0, %v1010
    %v1012 = vpop.f32.mrf.mxu0
    %1013 = vdwg.mxu0
    %1014 = vrot.lane.b32.xlu0 %v130, 112
    %v1015 = vpop.permute.xlu0 %1014
    %v1018 = vsel %vm143, %v827, 0
    %1020 = vmatprep.subr.mxu0 0.0
    %1021 = vmatpush1.msra.mxu0 0.0
    %1022 = vmatprep.subr.mxu0 0.0
    %1023 = vmatpush1.msra.mxu0 0.0
    %1024 = vmatprep.subr.mxu0 0.0
    %1025 = vmatpush1.msra.mxu0 0.0
    %1026 = vmatprep.subr.mxu0 0.0
    %1027 = vmatpush1.msra.mxu0 0.0
    %1028 = vmatprep.subr.mxu0 0.0
    %1029 = vmatpush1.msra.mxu0 0.0
    %1030 = vmatprep.subr.mxu0 0.0
    %1031 = vmatpush1.msra.mxu0 0.0
    %1032 = vmatprep.subr.mxu0 0.0
    %1033 = vmatpush1.msra.mxu0 0.0
    %1034 = vmatprep.subr.mxu0 0.0
    %1035 = vmatpush1.msra.mxu0 0.0
    %1036 = vmatprep.subr.mxu0 0.0
    %1037 = vmatpush1.msra.mxu0 0.0
    %1038 = vmatprep.subr.mxu0 0.0
    %1039 = vmatpush1.msra.mxu0 0.0
    %1040 = vmatprep.subr.mxu0 0.0
    %1041 = vmatpush1.msra.mxu0 0.0
    %1042 = vmatprep.subr.mxu0 0.0
    %1043 = vmatpush1.msra.mxu0 0.0
    %1044 = vmatprep.subr.mxu0 0.0
    %1045 = vmatpush1.msra.mxu0 0.0
    %1046 = vmatprep.subr.mxu0 0.0
    %1047 = vmatpush1.msra.mxu0 0.0
    %1048 = vmatprep.subr.mxu0 0.0
    %1049 = vmatpush1.msra.mxu0 0.0
    %1050 = vmatprep.subr.mxu0 0.0
    %1051 = vmatpush1.msra.mxu0 %v1015
    %1052 = vmatprep.subr.mxu0 0.0
    %1053 = vmatpush2.msra.mxu0 0.0
    %1054 = vmatprep.subr.mxu0 0.0
    %1055 = vmatpush2.msra.mxu0 0.0
    %1056 = vmatprep.subr.mxu0 0.0
    %1057 = vmatpush2.msra.mxu0 0.0
    %1058 = vmatprep.subr.mxu0 0.0
    %1059 = vmatpush2.msra.mxu0 0.0
    %1060 = vmatprep.subr.mxu0 0.0
    %1061 = vmatpush2.msra.mxu0 0.0
    %1062 = vmatprep.subr.mxu0 0.0
    %1063 = vmatpush2.msra.mxu0 0.0
    %1064 = vmatprep.subr.mxu0 0.0
    %1065 = vmatpush2.msra.mxu0 0.0
    %1066 = vmatprep.subr.mxu0 0.0
    %1067 = vmatpush2.msra.mxu0 0.0
    %1068 = vmatprep.subr.mxu0 0.0
    %1069 = vmatpush2.msra.mxu0 0.0
    %1070 = vmatprep.subr.mxu0 0.0
    %1071 = vmatpush2.msra.mxu0 0.0
    %1072 = vmatprep.subr.mxu0 0.0
    %1073 = vmatpush2.msra.mxu0 0.0
    %1074 = vmatprep.subr.mxu0 0.0
    %1075 = vmatpush2.msra.mxu0 0.0
    %1076 = vmatprep.subr.mxu0 0.0
    %1077 = vmatpush2.msra.mxu0 0.0
    %1078 = vmatprep.subr.mxu0 0.0
    %1079 = vmatpush2.msra.mxu0 0.0
    %1080 = vmatprep.subr.mxu0 0.0
    %1081 = vmatpush2.msra.mxu0 0.0
    %1082 = vmatprep.subr.mxu0 0.0
    %1083 = vmatpush2.msra.mxu0 0.0
    %1084 = vmatprep.mubr.f32.mxu0 0.0
    %1085 = vmatmul.mubr.f32.gmra.mxu0 %v1018
    %v1086 = vpop.f32.mrf.mxu0
    %v1087 = vadd.f32 0.0, %v1086
    %v1088 = vpop.f32.mrf.mxu0
    %1089 = vdwg.mxu0
    %1090 = vrot.lane.b32.xlu0 %v132, 112
    %v1091 = vpop.permute.xlu0 %1090
    %v1094 = vsel %vm143, %v829, 0
    %1096 = vmatprep.subr.mxu0 0.0
    %1097 = vmatpush1.msra.mxu0 0.0
    %1098 = vmatprep.subr.mxu0 0.0
    %1099 = vmatpush1.msra.mxu0 0.0
    %1100 = vmatprep.subr.mxu0 0.0
    %1101 = vmatpush1.msra.mxu0 0.0
    %1102 = vmatprep.subr.mxu0 0.0
    %1103 = vmatpush1.msra.mxu0 0.0
    %1104 = vmatprep.subr.mxu0 0.0
    %1105 = vmatpush1.msra.mxu0 0.0
    %1106 = vmatprep.subr.mxu0 0.0
    %1107 = vmatpush1.msra.mxu0 0.0
    %1108 = vmatprep.subr.mxu0 0.0
    %1109 = vmatpush1.msra.mxu0 0.0
    %1110 = vmatprep.subr.mxu0 0.0
    %1111 = vmatpush1.msra.mxu0 0.0
    %1112 = vmatprep.subr.mxu0 0.0
    %1113 = vmatpush1.msra.mxu0 0.0
    %1114 = vmatprep.subr.mxu0 0.0
    %1115 = vmatpush1.msra.mxu0 0.0
    %1116 = vmatprep.subr.mxu0 0.0
    %1117 = vmatpush1.msra.mxu0 0.0
    %1118 = vmatprep.subr.mxu0 0.0
    %1119 = vmatpush1.msra.mxu0 0.0
    %1120 = vmatprep.subr.mxu0 0.0
    %1121 = vmatpush1.msra.mxu0 0.0
    %1122 = vmatprep.subr.mxu0 0.0
    %1123 = vmatpush1.msra.mxu0 0.0
    %1124 = vmatprep.subr.mxu0 0.0
    %1125 = vmatpush1.msra.mxu0 0.0
    %1126 = vmatprep.subr.mxu0 0.0
    %1127 = vmatpush1.msra.mxu0 %v1091
    %1128 = vmatprep.subr.mxu0 0.0
    %1129 = vmatpush2.msra.mxu0 0.0
    %1130 = vmatprep.subr.mxu0 0.0
    %1131 = vmatpush2.msra.mxu0 0.0
    %1132 = vmatprep.subr.mxu0 0.0
    %1133 = vmatpush2.msra.mxu0 0.0
    %1134 = vmatprep.subr.mxu0 0.0
    %1135 = vmatpush2.msra.mxu0 0.0
    %1136 = vmatprep.subr.mxu0 0.0
    %1137 = vmatpush2.msra.mxu0 0.0
    %1138 = vmatprep.subr.mxu0 0.0
    %1139 = vmatpush2.msra.mxu0 0.0
    %1140 = vmatprep.subr.mxu0 0.0
    %1141 = vmatpush2.msra.mxu0 0.0
    %1142 = vmatprep.subr.mxu0 0.0
    %1143 = vmatpush2.msra.mxu0 0.0
    %1144 = vmatprep.subr.mxu0 0.0
    %1145 = vmatpush2.msra.mxu0 0.0
    %1146 = vmatprep.subr.mxu0 0.0
    %1147 = vmatpush2.msra.mxu0 0.0
    %1148 = vmatprep.subr.mxu0 0.0
    %1149 = vmatpush2.msra.mxu0 0.0
    %1150 = vmatprep.subr.mxu0 0.0
    %1151 = vmatpush2.msra.mxu0 0.0
    %1152 = vmatprep.subr.mxu0 0.0
    %1153 = vmatpush2.msra.mxu0 0.0
    %1154 = vmatprep.subr.mxu0 0.0
    %1155 = vmatpush2.msra.mxu0 0.0
    %1156 = vmatprep.subr.mxu0 0.0
    %1157 = vmatpush2.msra.mxu0 0.0
    %1158 = vmatprep.subr.mxu0 0.0
    %1159 = vmatpush2.msra.mxu0 0.0
    %1160 = vmatprep.mubr.f32.mxu0 0.0
    %1161 = vmatmul.mubr.f32.gmra.mxu0 %v1094
    %v1162 = vpop.f32.mrf.mxu0
    %v1163 = vadd.f32 0.0, %v1162
    %v1164 = vpop.f32.mrf.mxu0
    %1165 = vdwg.mxu0
    %1166 = vrot.lane.b32.xlu0 %v134, 112
    %v1167 = vpop.permute.xlu0 %1166
    %v1170 = vsel %vm143, %v831, 0
    %1172 = vmatprep.subr.mxu0 0.0
    %1173 = vmatpush1.msra.mxu0 0.0
    %1174 = vmatprep.subr.mxu0 0.0
    %1175 = vmatpush1.msra.mxu0 0.0
    %1176 = vmatprep.subr.mxu0 0.0
    %1177 = vmatpush1.msra.mxu0 0.0
    %1178 = vmatprep.subr.mxu0 0.0
    %1179 = vmatpush1.msra.mxu0 0.0
    %1180 = vmatprep.subr.mxu0 0.0
    %1181 = vmatpush1.msra.mxu0 0.0
    %1182 = vmatprep.subr.mxu0 0.0
    %1183 = vmatpush1.msra.mxu0 0.0
    %1184 = vmatprep.subr.mxu0 0.0
    %1185 = vmatpush1.msra.mxu0 0.0
    %1186 = vmatprep.subr.mxu0 0.0
    %1187 = vmatpush1.msra.mxu0 0.0
    %1188 = vmatprep.subr.mxu0 0.0
    %1189 = vmatpush1.msra.mxu0 0.0
    %1190 = vmatprep.subr.mxu0 0.0
    %1191 = vmatpush1.msra.mxu0 0.0
    %1192 = vmatprep.subr.mxu0 0.0
    %1193 = vmatpush1.msra.mxu0 0.0
    %1194 = vmatprep.subr.mxu0 0.0
    %1195 = vmatpush1.msra.mxu0 0.0
    %1196 = vmatprep.subr.mxu0 0.0
    %1197 = vmatpush1.msra.mxu0 0.0
    %1198 = vmatprep.subr.mxu0 0.0
    %1199 = vmatpush1.msra.mxu0 0.0
    %1200 = vmatprep.subr.mxu0 0.0
    %1201 = vmatpush1.msra.mxu0 0.0
    %1202 = vmatprep.subr.mxu0 0.0
    %1203 = vmatpush1.msra.mxu0 %v1167
    %1204 = vmatprep.subr.mxu0 0.0
    %1205 = vmatpush2.msra.mxu0 0.0
    %1206 = vmatprep.subr.mxu0 0.0
    %1207 = vmatpush2.msra.mxu0 0.0
    %1208 = vmatprep.subr.mxu0 0.0
    %1209 = vmatpush2.msra.mxu0 0.0
    %1210 = vmatprep.subr.mxu0 0.0
    %1211 = vmatpush2.msra.mxu0 0.0
    %1212 = vmatprep.subr.mxu0 0.0
    %1213 = vmatpush2.msra.mxu0 0.0
    %1214 = vmatprep.subr.mxu0 0.0
    %1215 = vmatpush2.msra.mxu0 0.0
    %1216 = vmatprep.subr.mxu0 0.0
    %1217 = vmatpush2.msra.mxu0 0.0
    %1218 = vmatprep.subr.mxu0 0.0
    %1219 = vmatpush2.msra.mxu0 0.0
    %1220 = vmatprep.subr.mxu0 0.0
    %1221 = vmatpush2.msra.mxu0 0.0
    %1222 = vmatprep.subr.mxu0 0.0
    %1223 = vmatpush2.msra.mxu0 0.0
    %1224 = vmatprep.subr.mxu0 0.0
    %1225 = vmatpush2.msra.mxu0 0.0
    %1226 = vmatprep.subr.mxu0 0.0
    %1227 = vmatpush2.msra.mxu0 0.0
    %1228 = vmatprep.subr.mxu0 0.0
    %1229 = vmatpush2.msra.mxu0 0.0
    %1230 = vmatprep.subr.mxu0 0.0
    %1231 = vmatpush2.msra.mxu0 0.0
    %1232 = vmatprep.subr.mxu0 0.0
    %1233 = vmatpush2.msra.mxu0 0.0
    %1234 = vmatprep.subr.mxu0 0.0
    %1235 = vmatpush2.msra.mxu0 0.0
    %1236 = vmatprep.mubr.f32.mxu0 0.0
    %1237 = vmatmul.mubr.f32.gmra.mxu0 %v1170
    %v1238 = vpop.f32.mrf.mxu0
    %v1239 = vadd.f32 0.0, %v1238
    %v1240 = vpop.f32.mrf.mxu0
    %1241 = vdwg.mxu0
    %1242 = vrot.lane.b32.xlu0 %v136, 112
    %v1243 = vpop.permute.xlu0 %1242
    %v1246 = vsel %vm143, %v833, 0
    %1248 = vmatprep.subr.mxu0 0.0
    %1249 = vmatpush1.msra.mxu0 0.0
    %1250 = vmatprep.subr.mxu0 0.0
    %1251 = vmatpush1.msra.mxu0 0.0
    %1252 = vmatprep.subr.mxu0 0.0
    %1253 = vmatpush1.msra.mxu0 0.0
    %1254 = vmatprep.subr.mxu0 0.0
    %1255 = vmatpush1.msra.mxu0 0.0
    %1256 = vmatprep.subr.mxu0 0.0
    %1257 = vmatpush1.msra.mxu0 0.0
    %1258 = vmatprep.subr.mxu0 0.0
    %1259 = vmatpush1.msra.mxu0 0.0
    %1260 = vmatprep.subr.mxu0 0.0
    %1261 = vmatpush1.msra.mxu0 0.0
    %1262 = vmatprep.subr.mxu0 0.0
    %1263 = vmatpush1.msra.mxu0 0.0
    %1264 = vmatprep.subr.mxu0 0.0
    %1265 = vmatpush1.msra.mxu0 0.0
    %1266 = vmatprep.subr.mxu0 0.0
    %1267 = vmatpush1.msra.mxu0 0.0
    %1268 = vmatprep.subr.mxu0 0.0
    %1269 = vmatpush1.msra.mxu0 0.0
    %1270 = vmatprep.subr.mxu0 0.0
    %1271 = vmatpush1.msra.mxu0 0.0
    %1272 = vmatprep.subr.mxu0 0.0
    %1273 = vmatpush1.msra.mxu0 0.0
    %1274 = vmatprep.subr.mxu0 0.0
    %1275 = vmatpush1.msra.mxu0 0.0
    %1276 = vmatprep.subr.mxu0 0.0
    %1277 = vmatpush1.msra.mxu0 0.0
    %1278 = vmatprep.subr.mxu0 0.0
    %1279 = vmatpush1.msra.mxu0 %v1243
    %1280 = vmatprep.subr.mxu0 0.0
    %1281 = vmatpush2.msra.mxu0 0.0
    %1282 = vmatprep.subr.mxu0 0.0
    %1283 = vmatpush2.msra.mxu0 0.0
    %1284 = vmatprep.subr.mxu0 0.0
    %1285 = vmatpush2.msra.mxu0 0.0
    %1286 = vmatprep.subr.mxu0 0.0
    %1287 = vmatpush2.msra.mxu0 0.0
    %1288 = vmatprep.subr.mxu0 0.0
    %1289 = vmatpush2.msra.mxu0 0.0
    %1290 = vmatprep.subr.mxu0 0.0
    %1291 = vmatpush2.msra.mxu0 0.0
    %1292 = vmatprep.subr.mxu0 0.0
    %1293 = vmatpush2.msra.mxu0 0.0
    %1294 = vmatprep.subr.mxu0 0.0
    %1295 = vmatpush2.msra.mxu0 0.0
    %1296 = vmatprep.subr.mxu0 0.0
    %1297 = vmatpush2.msra.mxu0 0.0
    %1298 = vmatprep.subr.mxu0 0.0
    %1299 = vmatpush2.msra.mxu0 0.0
    %1300 = vmatprep.subr.mxu0 0.0
    %1301 = vmatpush2.msra.mxu0 0.0
    %1302 = vmatprep.subr.mxu0 0.0
    %1303 = vmatpush2.msra.mxu0 0.0
    %1304 = vmatprep.subr.mxu0 0.0
    %1305 = vmatpush2.msra.mxu0 0.0
    %1306 = vmatprep.subr.mxu0 0.0
    %1307 = vmatpush2.msra.mxu0 0.0
    %1308 = vmatprep.subr.mxu0 0.0
    %1309 = vmatpush2.msra.mxu0 0.0
    %1310 = vmatprep.subr.mxu0 0.0
    %1311 = vmatpush2.msra.mxu0 0.0
    %1312 = vmatprep.mubr.f32.mxu0 0.0
    %1313 = vmatmul.mubr.f32.gmra.mxu0 %v1246
    %v1314 = vpop.f32.mrf.mxu0
    %v1315 = vadd.f32 0.0, %v1314
    %v1316 = vpop.f32.mrf.mxu0
    %1317 = vdwg.mxu0
    %1318 = vrot.lane.b32.xlu0 %v138, 112
    %v1319 = vpop.permute.xlu0 %1318
    %v1322 = vsel %vm143, %v835, 0
    %1324 = vmatprep.subr.mxu0 0.0
    %1325 = vmatpush1.msra.mxu0 0.0
    %1326 = vmatprep.subr.mxu0 0.0
    %1327 = vmatpush1.msra.mxu0 0.0
    %1328 = vmatprep.subr.mxu0 0.0
    %1329 = vmatpush1.msra.mxu0 0.0
    %1330 = vmatprep.subr.mxu0 0.0
    %1331 = vmatpush1.msra.mxu0 0.0
    %1332 = vmatprep.subr.mxu0 0.0
    %1333 = vmatpush1.msra.mxu0 0.0
    %1334 = vmatprep.subr.mxu0 0.0
    %1335 = vmatpush1.msra.mxu0 0.0
    %1336 = vmatprep.subr.mxu0 0.0
    %1337 = vmatpush1.msra.mxu0 0.0
    %1338 = vmatprep.subr.mxu0 0.0
    %1339 = vmatpush1.msra.mxu0 0.0
    %1340 = vmatprep.subr.mxu0 0.0
    %1341 = vmatpush1.msra.mxu0 0.0
    %1342 = vmatprep.subr.mxu0 0.0
    %1343 = vmatpush1.msra.mxu0 0.0
    %1344 = vmatprep.subr.mxu0 0.0
    %1345 = vmatpush1.msra.mxu0 0.0
    %1346 = vmatprep.subr.mxu0 0.0
    %1347 = vmatpush1.msra.mxu0 0.0
    %1348 = vmatprep.subr.mxu0 0.0
    %1349 = vmatpush1.msra.mxu0 0.0
    %1350 = vmatprep.subr.mxu0 0.0
    %1351 = vmatpush1.msra.mxu0 0.0
    %1352 = vmatprep.subr.mxu0 0.0
    %1353 = vmatpush1.msra.mxu0 0.0
    %1354 = vmatprep.subr.mxu0 0.0
    %1355 = vmatpush1.msra.mxu0 %v1319
    %1356 = vmatprep.subr.mxu0 0.0
    %1357 = vmatpush2.msra.mxu0 0.0
    %1358 = vmatprep.subr.mxu0 0.0
    %1359 = vmatpush2.msra.mxu0 0.0
    %1360 = vmatprep.subr.mxu0 0.0
    %1361 = vmatpush2.msra.mxu0 0.0
    %1362 = vmatprep.subr.mxu0 0.0
    %1363 = vmatpush2.msra.mxu0 0.0
    %1364 = vmatprep.subr.mxu0 0.0
    %1365 = vmatpush2.msra.mxu0 0.0
    %1366 = vmatprep.subr.mxu0 0.0
    %1367 = vmatpush2.msra.mxu0 0.0
    %1368 = vmatprep.subr.mxu0 0.0
    %1369 = vmatpush2.msra.mxu0 0.0
    %1370 = vmatprep.subr.mxu0 0.0
    %1371 = vmatpush2.msra.mxu0 0.0
    %1372 = vmatprep.subr.mxu0 0.0
    %1373 = vmatpush2.msra.mxu0 0.0
    %1374 = vmatprep.subr.mxu0 0.0
    %1375 = vmatpush2.msra.mxu0 0.0
    %1376 = vmatprep.subr.mxu0 0.0
    %1377 = vmatpush2.msra.mxu0 0.0
    %1378 = vmatprep.subr.mxu0 0.0
    %1379 = vmatpush2.msra.mxu0 0.0
    %1380 = vmatprep.subr.mxu0 0.0
    %1381 = vmatpush2.msra.mxu0 0.0
    %1382 = vmatprep.subr.mxu0 0.0
    %1383 = vmatpush2.msra.mxu0 0.0
    %1384 = vmatprep.subr.mxu0 0.0
    %1385 = vmatpush2.msra.mxu0 0.0
    %1386 = vmatprep.subr.mxu0 0.0
    %1387 = vmatpush2.msra.mxu0 0.0
    %1388 = vmatprep.mubr.f32.mxu0 0.0
    %1389 = vmatmul.mubr.f32.gmra.mxu0 %v1322
    %v1390 = vpop.f32.mrf.mxu0
    %v1391 = vadd.f32 0.0, %v1390
    %v1392 = vpop.f32.mrf.mxu0
    %1393 = vdwg.mxu0
    %1394 = vrot.lane.b32.xlu0 %v140, 112
    %v1395 = vpop.permute.xlu0 %1394
    %v1398 = vsel %vm143, %v837, 0
    %1400 = vmatprep.subr.mxu0 0.0
    %1401 = vmatpush1.msra.mxu0 0.0
    %1402 = vmatprep.subr.mxu0 0.0
    %1403 = vmatpush1.msra.mxu0 0.0
    %1404 = vmatprep.subr.mxu0 0.0
    %1405 = vmatpush1.msra.mxu0 0.0
    %1406 = vmatprep.subr.mxu0 0.0
    %1407 = vmatpush1.msra.mxu0 0.0
    %1408 = vmatprep.subr.mxu0 0.0
    %1409 = vmatpush1.msra.mxu0 0.0
    %1410 = vmatprep.subr.mxu0 0.0
    %1411 = vmatpush1.msra.mxu0 0.0
    %1412 = vmatprep.subr.mxu0 0.0
    %1413 = vmatpush1.msra.mxu0 0.0
    %1414 = vmatprep.subr.mxu0 0.0
    %1415 = vmatpush1.msra.mxu0 0.0
    %1416 = vmatprep.subr.mxu0 0.0
    %1417 = vmatpush1.msra.mxu0 0.0
    %1418 = vmatprep.subr.mxu0 0.0
    %1419 = vmatpush1.msra.mxu0 0.0
    %1420 = vmatprep.subr.mxu0 0.0
    %1421 = vmatpush1.msra.mxu0 0.0
    %1422 = vmatprep.subr.mxu0 0.0
    %1423 = vmatpush1.msra.mxu0 0.0
    %1424 = vmatprep.subr.mxu0 0.0
    %1425 = vmatpush1.msra.mxu0 0.0
    %1426 = vmatprep.subr.mxu0 0.0
    %1427 = vmatpush1.msra.mxu0 0.0
    %1428 = vmatprep.subr.mxu0 0.0
    %1429 = vmatpush1.msra.mxu0 0.0
    %1430 = vmatprep.subr.mxu0 0.0
    %1431 = vmatpush1.msra.mxu0 %v1395
    %1432 = vmatprep.subr.mxu0 0.0
    %1433 = vmatpush2.msra.mxu0 0.0
    %1434 = vmatprep.subr.mxu0 0.0
    %1435 = vmatpush2.msra.mxu0 0.0
    %1436 = vmatprep.subr.mxu0 0.0
    %1437 = vmatpush2.msra.mxu0 0.0
    %1438 = vmatprep.subr.mxu0 0.0
    %1439 = vmatpush2.msra.mxu0 0.0
    %1440 = vmatprep.subr.mxu0 0.0
    %1441 = vmatpush2.msra.mxu0 0.0
    %1442 = vmatprep.subr.mxu0 0.0
    %1443 = vmatpush2.msra.mxu0 0.0
    %1444 = vmatprep.subr.mxu0 0.0
    %1445 = vmatpush2.msra.mxu0 0.0
    %1446 = vmatprep.subr.mxu0 0.0
    %1447 = vmatpush2.msra.mxu0 0.0
    %1448 = vmatprep.subr.mxu0 0.0
    %1449 = vmatpush2.msra.mxu0 0.0
    %1450 = vmatprep.subr.mxu0 0.0
    %1451 = vmatpush2.msra.mxu0 0.0
    %1452 = vmatprep.subr.mxu0 0.0
    %1453 = vmatpush2.msra.mxu0 0.0
    %1454 = vmatprep.subr.mxu0 0.0
    %1455 = vmatpush2.msra.mxu0 0.0
    %1456 = vmatprep.subr.mxu0 0.0
    %1457 = vmatpush2.msra.mxu0 0.0
    %1458 = vmatprep.subr.mxu0 0.0
    %1459 = vmatpush2.msra.mxu0 0.0
    %1460 = vmatprep.subr.mxu0 0.0
    %1461 = vmatpush2.msra.mxu0 0.0
    %1462 = vmatprep.subr.mxu0 0.0
    %1463 = vmatpush2.msra.mxu0 0.0
    %1464 = vmatprep.mubr.f32.mxu0 0.0
    %1465 = vmatmul.mubr.f32.gmra.mxu0 %v1398
    %v1466 = vpop.f32.mrf.mxu0
    %v1467 = vadd.f32 0.0, %v1466
    %v1468 = vpop.f32.mrf.mxu0
    %1469 = vdwg.mxu0
    %v1470 = vrcp.pop %v840
    %v1471 = vrcp.pop %v843
    %v1472 = vrcp.pop %v846
    %v1473 = vrcp.pop %v849
    %v1474 = vrcp.pop %v852
    %v1475 = vrcp.pop %v855
    %v1476 = vrcp.pop %v858
    %v1477 = vrcp.pop %v861
    %v1478 = vmul.f32 %v935, %v1470
    %v1479 = vmul.f32 %v1011, %v1471
    %v1480 = vmul.f32 %v1087, %v1472
    %v1481 = vmul.f32 %v1163, %v1473
    %v1482 = vmul.f32 %v1239, %v1474
    %v1483 = vmul.f32 %v1315, %v1475
    %v1484 = vmul.f32 %v1391, %v1476
    %v1485 = vmul.f32 %v1467, %v1477
    %1488 = vrot.lane.b32.xlu0 %v1480, 8
    %v1489 = vpop.permute.xlu0 %1488
    %1490 = vrot.lane.b32.xlu0 %v1481, 8
    %v1491 = vpop.permute.xlu0 %1490
    %1496 = vrot.lane.b32.xlu0 %v1482, 16
    %v1497 = vpop.permute.xlu0 %1496
    %1498 = vrot.lane.b32.xlu0 %v1483, 16
    %v1499 = vpop.permute.xlu0 %1498
    %1504 = vrot.lane.b32.xlu0 %v1484, 24
    %v1505 = vpop.permute.xlu0 %1504
    %1506 = vrot.lane.b32.xlu0 %v1485, 24
    %v1507 = vpop.permute.xlu0 %1506
    %v1510 = vsel %vm143, %v1478, %v1489
    %v1511 = vsel %vm143, %v1479, %v1491
    %vm1512 = vcmask 130048
    %v1513 = vsel %vm1512, %v1510, %v1497
    %v1514 = vsel %vm1512, %v1511, %v1499
    %vm1515 = vcmask 195584
    %v1516 = vsel %vm1515, %v1513, %v1505
    %v1517 = vsel %vm1515, %v1514, %v1507
    %v1518 = vld [vmem:[#allocation2 + $0x60] sm:$0xff]
    %v1519 = vld [vmem:[#allocation2 + $0x68] sm:$0xff]
    %v1520 = vld [vmem:[#allocation2 + $0x70] sm:$0xff]
    %v1521 = vld [vmem:[#allocation2 + $0x78] sm:$0xff]
    %v1522 = vlaneseq
    %v1523 = vshrl.u32 %v1522, 7
    %v1524 = vsub.s32 1, %v1523
    %v1525 = vrot.slane %v28, %v1524
    %vm1526 = vcmask 261120
    %v1528 = vsel %vm1526, %v1516, 0
    %v1531 = vsel %vm1526, %v1517, 0
    %1533 = vmatprep.subr.mxu0 0.0
    %1534 = vmatpush1.msra.mxu0 0.0
    %1535 = vmatprep.subr.mxu0 0.0
    %1536 = vmatpush1.msra.mxu0 0.0
    %1537 = vmatprep.subr.mxu0 0.0
    %1538 = vmatpush1.msra.mxu0 0.0
    %1539 = vmatprep.subr.mxu0 0.0
    %1540 = vmatpush1.msra.mxu0 0.0
    %1541 = vmatprep.subr.mxu0 0.0
    %1542 = vmatpush1.msra.mxu0 0.0
    %1543 = vmatprep.subr.mxu0 0.0
    %1544 = vmatpush1.msra.mxu0 0.0
    %1545 = vmatprep.subr.mxu0 0.0
    %1546 = vmatpush1.msra.mxu0 0.0
    %1547 = vmatprep.subr.mxu0 0.0
    %1548 = vmatpush1.msra.mxu0 0.0
    %1549 = vmatprep.subr.mxu0 0.0
    %1550 = vmatpush1.msra.mxu0 0.0
    %1551 = vmatprep.subr.mxu0 0.0
    %1552 = vmatpush1.msra.mxu0 0.0
    %1553 = vmatprep.subr.mxu0 0.0
    %1554 = vmatpush1.msra.mxu0 0.0
    %1555 = vmatprep.subr.mxu0 0.0
    %1556 = vmatpush1.msra.mxu0 0.0
    %1557 = vmatprep.subr.mxu0 0.0
    %1558 = vmatpush1.msra.mxu0 %v1521
    %1559 = vmatprep.subr.mxu0 0.0
    %1560 = vmatpush1.msra.mxu0 %v1520
    %1561 = vmatprep.subr.mxu0 0.0
    %1562 = vmatpush1.msra.mxu0 %v1519
    %1563 = vmatprep.subr.mxu0 0.0
    %1564 = vmatpush1.msra.mxu0 %v1518
    %1565 = vmatprep.subr.mxu0 0.0
    %1566 = vmatpush2.msra.mxu0 0.0
    %1567 = vmatprep.subr.mxu0 0.0
    %1568 = vmatpush2.msra.mxu0 0.0
    %1569 = vmatprep.subr.mxu0 0.0
    %1570 = vmatpush2.msra.mxu0 0.0
    %1571 = vmatprep.subr.mxu0 0.0
    %1572 = vmatpush2.msra.mxu0 0.0
    %1573 = vmatprep.subr.mxu0 0.0
    %1574 = vmatpush2.msra.mxu0 0.0
    %1575 = vmatprep.subr.mxu0 0.0
    %1576 = vmatpush2.msra.mxu0 0.0
    %1577 = vmatprep.subr.mxu0 0.0
    %1578 = vmatpush2.msra.mxu0 0.0
    %1579 = vmatprep.subr.mxu0 0.0
    %1580 = vmatpush2.msra.mxu0 0.0
    %1581 = vmatprep.subr.mxu0 0.0
    %1582 = vmatpush2.msra.mxu0 0.0
    %1583 = vmatprep.subr.mxu0 0.0
    %1584 = vmatpush2.msra.mxu0 0.0
    %1585 = vmatprep.subr.mxu0 0.0
    %1586 = vmatpush2.msra.mxu0 0.0
    %1587 = vmatprep.subr.mxu0 0.0
    %1588 = vmatpush2.msra.mxu0 0.0
    %1589 = vmatprep.subr.mxu0 0.0
    %1590 = vmatpush2.msra.mxu0 0.0
    %1591 = vmatprep.subr.mxu0 0.0
    %1592 = vmatpush2.msra.mxu0 0.0
    %1593 = vmatprep.subr.mxu0 0.0
    %1594 = vmatpush2.msra.mxu0 0.0
    %1595 = vmatprep.subr.mxu0 0.0
    %1596 = vmatpush2.msra.mxu0 0.0
    %1597 = vmatprep.mubr.f32.mxu0 0.0
    %1598 = vmatmul.mubr.f32.gmra.mxu0 %v1528
    %v1599 = vpop.f32.mrf.mxu0
    %v1600 = vadd.f32 %v1525, %v1599
    %v1601 = vpop.f32.mrf.mxu0
    %1602 = vmatprep.mubr.f32.mxu0 0.0
    %1603 = vmatmul.mubr.f32.gmra.mxu0 %v1531
    %v1604 = vpop.f32.mrf.mxu0
    %v1605 = vadd.f32 %v1525, %v1604
    %v1606 = vpop.f32.mrf.mxu0
    %1607 = vdwg.mxu0
    %v1608 = vadd.f32 %v26, %v1600
    %v1609 = vadd.f32 %v27, %v1605
    %v1610 = vsel %vm1526, %v1608, 0.0
    %v1611 = vsel %vm1526, %v1609, 0.0
    %v1612 = vadd.f32 %v1610, %v1611
    %v1613 = vrot.slane %v1612, 4
    %v1614 = vadd.f32 %v1612, %v1613
    %v1615 = vrot.slane %v1614, 2
    %v1616 = vadd.f32 %v1614, %v1615
    %v1617 = vrot.slane %v1616, 1
    %v1618 = vadd.f32 %v1616, %v1617
    %v1619 = vrcp.pop 16.0
    %v1620 = vmul.f32 %v1618, %v1619
    %v1621 = vsub.f32 %v1608, %v1620
    %v1622 = vsub.f32 %v1609, %v1620
    %v1623 = vmul.f32 %v1621, %v1621
    %v1624 = vmul.f32 %v1622, %v1622
    %v1625 = vsel %vm1526, %v1623, 0.0
    %v1626 = vsel %vm1526, %v1624, 0.0
    %v1627 = vadd.f32 %v1625, %v1626
    %v1628 = vrot.slane %v1627, 4
    %v1629 = vadd.f32 %v1627, %v1628
    %v1630 = vrot.slane %v1629, 2
    %v1631 = vadd.f32 %v1629, %v1630
    %v1632 = vrot.slane %v1631, 1
    %v1633 = vadd.f32 %v1631, %v1632
    %v1634 = vmul.f32 %v1633, %v1619
    %v1635 = vadd.f32 %v1634, 1e-05
    %v1636 = vrsqrt.pop %v1635
    %v1637 = vmul.f32 %v1621, %v1636
    %v1638 = vmul.f32 %v1622, %v1636
    %v1639 = vlaneseq
    %v1640 = vshrl.u32 %v1639, 7
    %v1641 = vsub.s32 4, %v1640
    %v1642 = vrot.slane %v28, %v1641
    %v1643 = vmul.f32 %v1637, %v1642
    %v1644 = vmul.f32 %v1638, %v1642
    %v1645 = vlaneseq
    %v1646 = vshrl.u32 %v1645, 7
    %v1647 = vsub.s32 5, %v1646
    %v1648 = vrot.slane %v28, %v1647
    %v1649 = vadd.f32 %v1643, %v1648
    %v1650 = vadd.f32 %v1644, %v1648
    %v1651 = vld [vmem:[#allocation2 + $0x80] sm:$0xff]
    %v1652 = vld [vmem:[#allocation2 + $0x88] sm:$0xff]
    %v1653 = vld [vmem:[#allocation2 + $0x90] sm:$0xff]
    %v1654 = vld [vmem:[#allocation2 + $0x98] sm:$0xff]
    %v1655 = vlaneseq
    %v1656 = vshrl.u32 %v1655, 7
    %v1657 = vsub.s32 2, %v1656
    %v1658 = vrot.slane %v28, %v1657
    %v1660 = vsel %vm1526, %v1649, 0
    %v1663 = vsel %vm1526, %v1650, 0
    %1665 = vmatprep.subr.mxu0 0.0
    %1666 = vmatpush1.msra.mxu0 0.0
    %1667 = vmatprep.subr.mxu0 0.0
    %1668 = vmatpush1.msra.mxu0 0.0
    %1669 = vmatprep.subr.mxu0 0.0
    %1670 = vmatpush1.msra.mxu0 0.0
    %1671 = vmatprep.subr.mxu0 0.0
    %1672 = vmatpush1.msra.mxu0 0.0
    %1673 = vmatprep.subr.mxu0 0.0
    %1674 = vmatpush1.msra.mxu0 0.0
    %1675 = vmatprep.subr.mxu0 0.0
    %1676 = vmatpush1.msra.mxu0 0.0
    %1677 = vmatprep.subr.mxu0 0.0
    %1678 = vmatpush1.msra.mxu0 0.0
    %1679 = vmatprep.subr.mxu0 0.0
    %1680 = vmatpush1.msra.mxu0 0.0
    %1681 = vmatprep.subr.mxu0 0.0
    %1682 = vmatpush1.msra.mxu0 0.0
    %1683 = vmatprep.subr.mxu0 0.0
    %1684 = vmatpush1.msra.mxu0 0.0
    %1685 = vmatprep.subr.mxu0 0.0
    %1686 = vmatpush1.msra.mxu0 0.0
    %1687 = vmatprep.subr.mxu0 0.0
    %1688 = vmatpush1.msra.mxu0 0.0
    %1689 = vmatprep.subr.mxu0 0.0
    %1690 = vmatpush1.msra.mxu0 %v1654
    %1691 = vmatprep.subr.mxu0 0.0
    %1692 = vmatpush1.msra.mxu0 %v1653
    %1693 = vmatprep.subr.mxu0 0.0
    %1694 = vmatpush1.msra.mxu0 %v1652
    %1695 = vmatprep.subr.mxu0 0.0
    %1696 = vmatpush1.msra.mxu0 %v1651
    %1697 = vmatprep.subr.mxu0 0.0
    %1698 = vmatpush2.msra.mxu0 0.0
    %1699 = vmatprep.subr.mxu0 0.0
    %1700 = vmatpush2.msra.mxu0 0.0
    %1701 = vmatprep.subr.mxu0 0.0
    %1702 = vmatpush2.msra.mxu0 0.0
    %1703 = vmatprep.subr.mxu0 0.0
    %1704 = vmatpush2.msra.mxu0 0.0
    %1705 = vmatprep.subr.mxu0 0.0
    %1706 = vmatpush2.msra.mxu0 0.0
    %1707 = vmatprep.subr.mxu0 0.0
    %1708 = vmatpush2.msra.mxu0 0.0
    %1709 = vmatprep.subr.mxu0 0.0
    %1710 = vmatpush2.msra.mxu0 0.0
    %1711 = vmatprep.subr.mxu0 0.0
    %1712 = vmatpush2.msra.mxu0 0.0
    %1713 = vmatprep.subr.mxu0 0.0
    %1714 = vmatpush2.msra.mxu0 0.0
    %1715 = vmatprep.subr.mxu0 0.0
    %1716 = vmatpush2.msra.mxu0 0.0
    %1717 = vmatprep.subr.mxu0 0.0
    %1718 = vmatpush2.msra.mxu0 0.0
    %1719 = vmatprep.subr.mxu0 0.0
    %1720 = vmatpush2.msra.mxu0 0.0
    %1721 = vmatprep.subr.mxu0 0.0
    %1722 = vmatpush2.msra.mxu0 0.0
    %1723 = vmatprep.subr.mxu0 0.0
    %1724 = vmatpush2.msra.mxu0 0.0
    %1725 = vmatprep.subr.mxu0 0.0
    %1726 = vmatpush2.msra.mxu0 0.0
    %1727 = vmatprep.subr.mxu0 0.0
    %1728 = vmatpush2.msra.mxu0 0.0
    %1729 = vmatprep.mubr.f32.mxu0 0.0
    %1730 = vmatmul.mubr.f32.gmra.mxu0 %v1660
    %v1731 = vpop.f32.mrf.mxu0
    %v1732 = vadd.f32 %v1658, %v1731
    %v1733 = vpop.f32.mrf.mxu0
    %1734 = vmatprep.mubr.f32.mxu0 0.0
    %1735 = vmatmul.mubr.f32.gmra.mxu0 %v1663
    %v1736 = vpop.f32.mrf.mxu0
    %v1737 = vadd.f32 %v1658, %v1736
    %v1738 = vpop.f32.mrf.mxu0
    %1739 = vdwg.mxu0
    %v1740 = vmax.f32 %v1732, 0.0
    %v1741 = vmax.f32 %v1737, 0.0
    %v1742 = vld [vmem:[#allocation2 + $0xa0] sm:$0xff]
    %v1743 = vld [vmem:[#allocation2 + $0xa8] sm:$0xff]
    %v1744 = vld [vmem:[#allocation2 + $0xb0] sm:$0xff]
    %v1745 = vld [vmem:[#allocation2 + $0xb8] sm:$0xff]
    %v1746 = vld [vmem:[#allocation2 + $0xc0] sm:$0xff]
    %v1747 = vld [vmem:[#allocation2 + $0xc8] sm:$0xff]
    %v1748 = vld [vmem:[#allocation2 + $0xd0] sm:$0xff]
    %v1749 = vld [vmem:[#allocation2 + $0xd8] sm:$0xff]
    %v1750 = vlaneseq
    %v1751 = vshrl.u32 %v1750, 7
    %v1752 = vsub.s32 3, %v1751
    %v1753 = vrot.slane %v28, %v1752
    %vm1754 = vcmask 523264
    %v1756 = vsel %vm1754, %v1740, 0
    %v1759 = vsel %vm1754, %v1741, 0
    %1761 = vmatprep.subr.mxu0 0.0
    %1762 = vmatpush1.msra.mxu0 0.0
    %1763 = vmatprep.subr.mxu0 0.0
    %1764 = vmatpush1.msra.mxu0 0.0
    %1765 = vmatprep.subr.mxu0 0.0
    %1766 = vmatpush1.msra.mxu0 0.0
    %1767 = vmatprep.subr.mxu0 0.0
    %1768 = vmatpush1.msra.mxu0 0.0
    %1769 = vmatprep.subr.mxu0 0.0
    %1770 = vmatpush1.msra.mxu0 0.0
    %1771 = vmatprep.subr.mxu0 0.0
    %1772 = vmatpush1.msra.mxu0 0.0
    %1773 = vmatprep.subr.mxu0 0.0
    %1774 = vmatpush1.msra.mxu0 0.0
    %1775 = vmatprep.subr.mxu0 0.0
    %1776 = vmatpush1.msra.mxu0 0.0
    %1777 = vmatprep.subr.mxu0 0.0
    %1778 = vmatpush1.msra.mxu0 %v1749
    %1779 = vmatprep.subr.mxu0 0.0
    %1780 = vmatpush1.msra.mxu0 %v1748
    %1781 = vmatprep.subr.mxu0 0.0
    %1782 = vmatpush1.msra.mxu0 %v1747
    %1783 = vmatprep.subr.mxu0 0.0
    %1784 = vmatpush1.msra.mxu0 %v1746
    %1785 = vmatprep.subr.mxu0 0.0
    %1786 = vmatpush1.msra.mxu0 %v1745
    %1787 = vmatprep.subr.mxu0 0.0
    %1788 = vmatpush1.msra.mxu0 %v1744
    %1789 = vmatprep.subr.mxu0 0.0
    %1790 = vmatpush1.msra.mxu0 %v1743
    %1791 = vmatprep.subr.mxu0 0.0
    %1792 = vmatpush1.msra.mxu0 %v1742
    %1793 = vmatprep.subr.mxu0 0.0
    %1794 = vmatpush2.msra.mxu0 0.0
    %1795 = vmatprep.subr.mxu0 0.0
    %1796 = vmatpush2.msra.mxu0 0.0
    %1797 = vmatprep.subr.mxu0 0.0
    %1798 = vmatpush2.msra.mxu0 0.0
    %1799 = vmatprep.subr.mxu0 0.0
    %1800 = vmatpush2.msra.mxu0 0.0
    %1801 = vmatprep.subr.mxu0 0.0
    %1802 = vmatpush2.msra.mxu0 0.0
    %1803 = vmatprep.subr.mxu0 0.0
    %1804 = vmatpush2.msra.mxu0 0.0
    %1805 = vmatprep.subr.mxu0 0.0
    %1806 = vmatpush2.msra.mxu0 0.0
    %1807 = vmatprep.subr.mxu0 0.0
    %1808 = vmatpush2.msra.mxu0 0.0
    %1809 = vmatprep.subr.mxu0 0.0
    %1810 = vmatpush2.msra.mxu0 0.0
    %1811 = vmatprep.subr.mxu0 0.0
    %1812 = vmatpush2.msra.mxu0 0.0
    %1813 = vmatprep.subr.mxu0 0.0
    %1814 = vmatpush2.msra.mxu0 0.0
    %1815 = vmatprep.subr.mxu0 0.0
    %1816 = vmatpush2.msra.mxu0 0.0
    %1817 = vmatprep.subr.mxu0 0.0
    %1818 = vmatpush2.msra.mxu0 0.0
    %1819 = vmatprep.subr.mxu0 0.0
    %1820 = vmatpush2.msra.mxu0 0.0
    %1821 = vmatprep.subr.mxu0 0.0
    %1822 = vmatpush2.msra.mxu0 0.0
    %1823 = vmatprep.subr.mxu0 0.0
    %1824 = vmatpush2.msra.mxu0 0.0
    %1825 = vmatprep.mubr.f32.mxu0 0.0
    %1826 = vmatmul.mubr.f32.gmra.mxu0 %v1756
    %v1827 = vpop.f32.mrf.mxu0
    %v1828 = vadd.f32 %v1753, %v1827
    %v1829 = vpop.f32.mrf.mxu0
    %1830 = vmatprep.mubr.f32.mxu0 0.0
    %1831 = vmatmul.mubr.f32.gmra.mxu0 %v1759
    %v1832 = vpop.f32.mrf.mxu0
    %v1833 = vadd.f32 %v1753, %v1832
    %v1834 = vpop.f32.mrf.mxu0
    %1835 = vdwg.mxu0
    %v1836 = vadd.f32 %v1649, %v1828
    %v1837 = vadd.f32 %v1650, %v1833
    %v1838 = vsel %vm1526, %v1836, 0.0
    %v1839 = vsel %vm1526, %v1837, 0.0
    %v1840 = vadd.f32 %v1838, %v1839
    %v1841 = vrot.slane %v1840, 4
    %v1842 = vadd.f32 %v1840, %v1841
    %v1843 = vrot.slane %v1842, 2
    %v1844 = vadd.f32 %v1842, %v1843
    %v1845 = vrot.slane %v1844, 1
    %v1846 = vadd.f32 %v1844, %v1845
    %v1847 = vmul.f32 %v1846, %v1619
    %v1848 = vsub.f32 %v1836, %v1847
    %v1849 = vsub.f32 %v1837, %v1847
    %v1850 = vmul.f32 %v1848, %v1848
    %v1851 = vmul.f32 %v1849, %v1849
    %v1852 = vsel %vm1526, %v1850, 0.0
    %v1853 = vsel %vm1526, %v1851, 0.0
    %v1854 = vadd.f32 %v1852, %v1853
    %v1855 = vrot.slane %v1854, 4
    %v1856 = vadd.f32 %v1854, %v1855
    %v1857 = vrot.slane %v1856, 2
    %v1858 = vadd.f32 %v1856, %v1857
    %v1859 = vrot.slane %v1858, 1
    %v1860 = vadd.f32 %v1858, %v1859
    %v1861 = vmul.f32 %v1860, %v1619
    %v1862 = vadd.f32 %v1861, 1e-05
    %v1863 = vrsqrt.pop %v1862
    %v1864 = vmul.f32 %v1848, %v1863
    %v1865 = vmul.f32 %v1849, %v1863
    %v1866 = vlaneseq
    %v1867 = vshrl.u32 %v1866, 7
    %v1868 = vsub.s32 6, %v1867
    %v1869 = vrot.slane %v28, %v1868
    %v1870 = vmul.f32 %v1864, %v1869
    %v1871 = vmul.f32 %v1865, %v1869
    %v1872 = vlaneseq
    %v1873 = vshrl.u32 %v1872, 7
    %v1874 = vsub.s32 7, %v1873
    %v1875 = vrot.slane %v28, %v1874
    %v1876 = vadd.f32 %v1870, %v1875
    %v1877 = vadd.f32 %v1871, %v1875
    %1878 = vst.msk [vmem:[#allocation5] sm:$0xff] %vm1526, %v1876
    %1879 = vst.msk [vmem:[#allocation5 + $0x8] sm:$0xff] %vm1526, %v1877
    // Predicated region
    $region14: #{graph_encoder_layer.1} parent=1 // pred_check
      _
    $region15: #{graph_encoder_layer.1} parent=1 // pred_check_branch
      %1881 = sbr.rel (0) target = $region17
    $region16: #{graph_encoder_layer.1} parent=1 // pred_region
      %s1883 = ssub.s32 256, 256
      %1884 = vsyncadd [#allocation4], %s1883
      %s1885 = sshll.u32 [#allocation5], 4
      %s1886 = int_to_ptr.vmem [resolvable:$true] %s1885
      %1891 = dma.vmem_to_hbm [thread:$0]  %s1886, 256, %s2, [#allocation4], 128, 128, 8
    $region17: #{graph_encoder_layer.1} parent=1 // pred_fallthru
      _
    // Predicated region
    $region18: #{graph_encoder_layer.1} parent=1 // pred_check
      _
    $region19: #{graph_encoder_layer.1} parent=1 // pred_check_branch
      %1893 = sbr.rel (0) target = $region21
    $region20: #{graph_encoder_layer.1} parent=1 // pred_region
      %1894 = dma.done [#allocation4], 256
    $region21: #{graph_encoder_layer.1} parent=1 // pred_fallthru
      _
    %1895 = vsyncpa [#allocation3], 1
    %1896 = vsyncpa [#allocation4], 1

</llo_original>
